<compile_context>
chip_gen: v6e
topology: v6e:2x2x1
jax: 0.10.0
libtpu: 0.0.40
codegen_flags: <defaults>
</compile_context>

<pallas_src>
import jax
import jax.numpy as jnp
from jax.experimental import pallas as pl
from jax.experimental.pallas import tpu as pltpu

# SELU constants (match torch.nn.functional.selu)
_SELU_ALPHA = 1.6732632423543772848170429916717
_SELU_SCALE = 1.0507009873554804934193349852946


def _selu(v):
    # exp -> EUP, compare/select/mul -> VPU.
    return _SELU_SCALE * jnp.where(v > 0, v, _SELU_ALPHA * (jnp.exp(v) - 1.0))


def _round_up(n, m):
    return ((n + m - 1) // m) * m


def _make_encoder_kernel(compute_dtype, selu_dtype):
    def encoder_kernel(x_ref, w2_ref, b2_ref, w3_ref, b3_ref, w4_ref, b4_ref, y_ref):
        # In-kernel cast: the f32 input block is DMA'd once from HBM and cast to the
        # bf16 MXU dtype here (no separate wrapper-side cast pass over x in HBM).
        x = x_ref[...].astype(compute_dtype)

        # Layer 1: (tile_b, F) @ (F, 512), f32 accumulation, SELU, re-cast to bf16
        # so the (tile_b, 512) intermediate feeds the next MXU matmul at half the
        # vreg/VMEM pressure.
        a1 = jnp.dot(x, w2_ref[...], preferred_element_type=jnp.float32) + b2_ref[...]
        h1 = _selu(a1.astype(selu_dtype)).astype(compute_dtype)

        # Layer 2: (tile_b, 512) @ (512, 128)
        a2 = jnp.dot(h1, w3_ref[...], preferred_element_type=jnp.float32) + b3_ref[...]
        h2 = _selu(a2.astype(selu_dtype)).astype(compute_dtype)

        # Layer 3: (tile_b, 128) @ (128, C_pad); SELU kept in f32 (tiny, precision).
        a3 = jnp.dot(h2, w4_ref[...], preferred_element_type=jnp.float32) + b4_ref[...]
        y_ref[...] = _selu(a3).astype(y_ref.dtype)

    return encoder_kernel


def encoder_forward(x, params, *, tile_b=None, compute_dtype=jnp.bfloat16,
                    selu_dtype=jnp.float32, vmem_limit_bytes=None):
    """x: (B, input_size) f32. params: dict of w2,b2,w3,b3,w4,b4 in (in,out) layout."""
    B, F = x.shape
    w2, b2 = params["w2"], params["b2"]   # (F, 512),   (1, 512)
    w3, b3 = params["w3"], params["b3"]   # (512, 128), (1, 128)
    w4, b4 = params["w4"], params["b4"]   # (128, C),   (1, C)
    C = w4.shape[1]
    out_dtype = x.dtype

    # ---- batch tiling --------------------------------------------------------
    # Goals: per-step MXU work >> ~0.35 us grid-step overhead (big tiles for big B),
    # >=2 grid steps for mid/large B so v7x's 2 TensorCores both get work, and a
    # per-step footprint that fits v7x's ~32 MiB scoped VMEM.
    if tile_b is None:
        if B <= 512:
            tile_b = _round_up(B, 16)                  # single small tile
        elif B <= 4096:
            tile_b = _round_up(-(-B // 2), 16)         # >=2 steps for the 2 v7x TCs
        else:
            tile_b = 2048                              # amortizes step overhead, v7x-safe
    tile_b = _round_up(min(tile_b, _round_up(B, 16)), 16)
    # VMEM safety for very wide inputs: keep the double-buffered f32 x block <= ~8 MiB.
    max_rows = max(256, (8 * 1024 * 1024) // max(F * 4, 1))
    tile_b = max(16, min(tile_b, max(16, (max_rows // 16) * 16)))
    B_pad = _round_up(B, tile_b)
    if B_pad != B:
        x = jnp.pad(x, ((0, B_pad - B), (0, 0)))       # stays f32; cast happens in-kernel

    # ---- dtypes & lane-dense output padding ----------------------------------
    # Weights are tiny: casting them once in the wrapper is negligible HBM traffic.
    w2c, w3c = w2.astype(compute_dtype), w3.astype(compute_dtype)
    b2f, b3f = b2.astype(jnp.float32), b3.astype(jnp.float32)
    C_pad = _round_up(max(C, 128), 128)                # lane-dense (unmasked) stores
    w4p = jnp.pad(w4.astype(compute_dtype), ((0, 0), (0, C_pad - C)))
    b4p = jnp.pad(b4.astype(jnp.float32), ((0, 0), (0, C_pad - C)))

    grid = (B_pad // tile_b,)
    kernel = _make_encoder_kernel(compute_dtype, selu_dtype)

    w_itemsize = jnp.dtype(compute_dtype).itemsize
    cost = pl.CostEstimate(
        flops=2 * B_pad * (F * 512 + 512 * 128 + 128 * C_pad),
        transcendentals=B_pad * (512 + 128 + C_pad),
        bytes_accessed=(B_pad * F * jnp.dtype(x.dtype).itemsize            # f32 x read
                        + (F * 512 + 512 * 128 + 128 * C_pad) * w_itemsize  # bf16 weights
                        + (512 + 128 + C_pad) * 4                           # f32 biases
                        + B_pad * C_pad * jnp.dtype(out_dtype).itemsize),   # output
    )

    compiler_kwargs = dict(dimension_semantics=("parallel",))
    if vmem_limit_bytes is not None:
        # e.g. raise this on v5e (16 MiB scoped default) when pushing tile_b past ~2048.
        compiler_kwargs["vmem_limit_bytes"] = vmem_limit_bytes

    def _invariant_spec(a, single_buffer):
        idx = lambda i, _nd=a.ndim: (0,) * _nd
        if single_buffer and hasattr(pl, "Buffered"):
            # Grid-invariant block: fetched once, so a second pipeline buffer is
            # dead VMEM -> request single-buffering.
            return pl.BlockSpec(a.shape, idx, pipeline_mode=pl.Buffered(1))
        return pl.BlockSpec(a.shape, idx)

    def _call(single_buffer_weights):
        in_specs = [pl.BlockSpec((tile_b, F), lambda i: (i, 0))]
        in_specs += [_invariant_spec(a, single_buffer_weights)
                     for a in (w2c, b2f, w3c, b3f, w4p, b4p)]
        return pl.pallas_call(
            kernel,
            out_shape=jax.ShapeDtypeStruct((B_pad, C_pad), out_dtype),
            grid_spec=pltpu.PrefetchScalarGridSpec(
                num_scalar_prefetch=0,
                grid=grid,
                in_specs=in_specs,
                out_specs=pl.BlockSpec((tile_b, C_pad), lambda i: (i, 0)),
            ),
            compiler_params=pltpu.CompilerParams(**compiler_kwargs),
            cost_estimate=cost,
        )(x, w2c, b2f, w3c, b3f, w4p, b4p)

    try:
        out = _call(True)
    except Exception:
        # pipeline_mode=pl.Buffered(1) unsupported on this jax build -> default buffering.
        out = _call(False)

    if B_pad != B or C_pad != C:
        out = out[:B, :C]
    return out


def init_params(key, input_size, code_layer_size, dtype=jnp.float32):
    """Deterministic synthetic init (PyTorch-style uniform bounds)."""
    ks = jax.random.split(key, 6)
    dims = [(input_size, 512), (512, 128), (128, code_layer_size)]
    names = ["2", "3", "4"]
    params = {}
    for (fin, fout), n, kw, kb in zip(dims, names, ks[0::2], ks[1::2]):
        bound = 1.0 / (fin ** 0.5)
        params[f"w{n}"] = jax.random.uniform(
            kw, (fin, fout), dtype, minval=-bound, maxval=bound)
        params[f"b{n}"] = jax.random.uniform(
            kb, (1, fout), dtype, minval=-bound, maxval=bound)
    return params


def encoder_ref(x, p):
    # Pure-JAX f32 reference (matches the PyTorch forward).
    h1 = _selu(x @ p["w2"] + p["b2"])
    h2 = _selu(h1 @ p["w3"] + p["b3"])
    return _selu(h2 @ p["w4"] + p["b4"])


if __name__ == "__main__":
    key = jax.random.PRNGKey(0)
    k_x, k_p = jax.random.split(key)

    batch = 8
    input_size = 256
    code_layer_size = 32

    x = jax.random.normal(k_x, (batch, input_size), dtype=jnp.float32)
    params = init_params(k_p, input_size, code_layer_size)

    y = jax.block_until_ready(encoder_forward(x, params))
    y_ref = encoder_ref(x, params)

    assert y.shape == (batch, code_layer_size)
    assert y.dtype == x.dtype
    # bf16 MXU operands with f32 accumulation: compare against the f32
    # reference with a correspondingly looser tolerance.
    assert jnp.allclose(y, y_ref, atol=2e-2, rtol=2e-2), "mismatch vs JAX reference"

    print("KERNEL_OK")
</pallas_src>

<mosaic_0001>
module attributes {stable_mosaic.version = 11 : i64} {
  func.func @encoder_kernel(%arg0: i32, %arg1: memref<16x256xf32, #tpu.memory_space<vmem>>, %arg2: memref<256x512xbf16, #tpu.memory_space<vmem>>, %arg3: memref<1x512xf32, #tpu.memory_space<vmem>>, %arg4: memref<512x128xbf16, #tpu.memory_space<vmem>>, %arg5: memref<1x128xf32, #tpu.memory_space<vmem>>, %arg6: memref<128x128xbf16, #tpu.memory_space<vmem>>, %arg7: memref<1x128xf32, #tpu.memory_space<vmem>>, %arg8: memref<16x128xf32, #tpu.memory_space<vmem>>) attributes {dimension_semantics = [#tpu.dimension_semantics<parallel>], iteration_bounds = array<i64: 1>, scalar_prefetch = 0 : i64, scratch_operands = 0 : i64, tpu.core_type = #tpu.core_type<tc>, window_params = [{transform_indices = @transform_0, window_bounds = array<i64: 16, 256>}, {pipeline_mode = #tpu.pipeline_mode<synchronous>, transform_indices = @transform_1, window_bounds = array<i64: 256, 512>}, {pipeline_mode = #tpu.pipeline_mode<synchronous>, transform_indices = @transform_2, window_bounds = array<i64: 1, 512>}, {pipeline_mode = #tpu.pipeline_mode<synchronous>, transform_indices = @transform_3, window_bounds = array<i64: 512, 128>}, {pipeline_mode = #tpu.pipeline_mode<synchronous>, transform_indices = @transform_4, window_bounds = array<i64: 1, 128>}, {pipeline_mode = #tpu.pipeline_mode<synchronous>, transform_indices = @transform_5, window_bounds = array<i64: 128, 128>}, {pipeline_mode = #tpu.pipeline_mode<synchronous>, transform_indices = @transform_6, window_bounds = array<i64: 1, 128>}, {transform_indices = @transform_7, window_bounds = array<i64: 16, 128>}]} {
    %c0 = arith.constant 0 : index
    %c0_0 = arith.constant 0 : index
    %0 = vector.load %arg1[%c0, %c0_0] : memref<16x256xf32, #tpu.memory_space<vmem>>, vector<16x256xf32>
    %1 = arith.truncf %0 : vector<16x256xf32> to vector<16x256xbf16>
    %c0_1 = arith.constant 0 : index
    %c0_2 = arith.constant 0 : index
    %2 = vector.load %arg2[%c0_1, %c0_2] : memref<256x512xbf16, #tpu.memory_space<vmem>>, vector<256x512xbf16>
    %cst = arith.constant dense<0.000000e+00> : vector<16x512xf32>
    %3 = tpu.matmul %1, %2, %cst {dimension_numbers = #tpu.dot_dimension_numbers<[1], [0], [0], [1], [0, 0, 1, 1], [], []>} : vector<16x256xbf16>, vector<256x512xbf16>, vector<16x512xf32> -> vector<16x512xf32>
    %c0_3 = arith.constant 0 : index
    %c0_4 = arith.constant 0 : index
    %4 = vector.load %arg3[%c0_3, %c0_4] : memref<1x512xf32, #tpu.memory_space<vmem>>, vector<1x512xf32>
    %5 = vector.broadcast %4 : vector<1x512xf32> to vector<16x512xf32>
    %6 = arith.addf %3, %5 : vector<16x512xf32>
    %cst_5 = arith.constant 0.000000e+00 : f32
    %7 = vector.broadcast %cst_5 : f32 to vector<16x512xf32>
    %8 = arith.cmpf ogt, %6, %7 : vector<16x512xf32>
    %9 = math.exp %6 : vector<16x512xf32>
    %cst_6 = arith.constant 1.000000e+00 : f32
    %10 = vector.broadcast %cst_6 : f32 to vector<16x512xf32>
    %11 = arith.subf %9, %10 : vector<16x512xf32>
    %cst_7 = arith.constant 1.67326319 : f32
    %12 = vector.broadcast %cst_7 : f32 to vector<16x512xf32>
    %13 = arith.mulf %12, %11 : vector<16x512xf32>
    %14 = arith.select %8, %6, %13 : vector<16x512xi1>, vector<16x512xf32>
    %cst_8 = arith.constant 1.05070102 : f32
    %15 = vector.broadcast %cst_8 : f32 to vector<16x512xf32>
    %16 = arith.mulf %15, %14 : vector<16x512xf32>
    %17 = arith.truncf %16 : vector<16x512xf32> to vector<16x512xbf16>
    %c0_9 = arith.constant 0 : index
    %c0_10 = arith.constant 0 : index
    %18 = vector.load %arg4[%c0_9, %c0_10] : memref<512x128xbf16, #tpu.memory_space<vmem>>, vector<512x128xbf16>
    %cst_11 = arith.constant dense<0.000000e+00> : vector<16x128xf32>
    %19 = tpu.matmul %17, %18, %cst_11 {dimension_numbers = #tpu.dot_dimension_numbers<[1], [0], [0], [1], [0, 0, 1, 1], [], []>} : vector<16x512xbf16>, vector<512x128xbf16>, vector<16x128xf32> -> vector<16x128xf32>
    %c0_12 = arith.constant 0 : index
    %c0_13 = arith.constant 0 : index
    %20 = vector.load %arg5[%c0_12, %c0_13] : memref<1x128xf32, #tpu.memory_space<vmem>>, vector<1x128xf32>
    %21 = vector.broadcast %20 : vector<1x128xf32> to vector<16x128xf32>
    %22 = arith.addf %19, %21 : vector<16x128xf32>
    %cst_14 = arith.constant 0.000000e+00 : f32
    %23 = vector.broadcast %cst_14 : f32 to vector<16x128xf32>
    %24 = arith.cmpf ogt, %22, %23 : vector<16x128xf32>
    %25 = math.exp %22 : vector<16x128xf32>
    %cst_15 = arith.constant 1.000000e+00 : f32
    %26 = vector.broadcast %cst_15 : f32 to vector<16x128xf32>
    %27 = arith.subf %25, %26 : vector<16x128xf32>
    %cst_16 = arith.constant 1.67326319 : f32
    %28 = vector.broadcast %cst_16 : f32 to vector<16x128xf32>
    %29 = arith.mulf %28, %27 : vector<16x128xf32>
    %30 = arith.select %24, %22, %29 : vector<16x128xi1>, vector<16x128xf32>
    %cst_17 = arith.constant 1.05070102 : f32
    %31 = vector.broadcast %cst_17 : f32 to vector<16x128xf32>
    %32 = arith.mulf %31, %30 : vector<16x128xf32>
    %33 = arith.truncf %32 : vector<16x128xf32> to vector<16x128xbf16>
    %c0_18 = arith.constant 0 : index
    %c0_19 = arith.constant 0 : index
    %34 = vector.load %arg6[%c0_18, %c0_19] : memref<128x128xbf16, #tpu.memory_space<vmem>>, vector<128x128xbf16>
    %cst_20 = arith.constant dense<0.000000e+00> : vector<16x128xf32>
    %35 = tpu.matmul %33, %34, %cst_20 {dimension_numbers = #tpu.dot_dimension_numbers<[1], [0], [0], [1], [0, 0, 1, 1], [], []>} : vector<16x128xbf16>, vector<128x128xbf16>, vector<16x128xf32> -> vector<16x128xf32>
    %c0_21 = arith.constant 0 : index
    %c0_22 = arith.constant 0 : index
    %36 = vector.load %arg7[%c0_21, %c0_22] : memref<1x128xf32, #tpu.memory_space<vmem>>, vector<1x128xf32>
    %37 = vector.broadcast %36 : vector<1x128xf32> to vector<16x128xf32>
    %38 = arith.addf %35, %37 : vector<16x128xf32>
    %cst_23 = arith.constant 0.000000e+00 : f32
    %39 = vector.broadcast %cst_23 : f32 to vector<16x128xf32>
    %40 = arith.cmpf ogt, %38, %39 : vector<16x128xf32>
    %41 = math.exp %38 : vector<16x128xf32>
    %cst_24 = arith.constant 1.000000e+00 : f32
    %42 = vector.broadcast %cst_24 : f32 to vector<16x128xf32>
    %43 = arith.subf %41, %42 : vector<16x128xf32>
    %cst_25 = arith.constant 1.67326319 : f32
    %44 = vector.broadcast %cst_25 : f32 to vector<16x128xf32>
    %45 = arith.mulf %44, %43 : vector<16x128xf32>
    %46 = arith.select %40, %38, %45 : vector<16x128xi1>, vector<16x128xf32>
    %cst_26 = arith.constant 1.05070102 : f32
    %47 = vector.broadcast %cst_26 : f32 to vector<16x128xf32>
    %48 = arith.mulf %47, %46 : vector<16x128xf32>
    %c0_27 = arith.constant 0 : index
    %c0_28 = arith.constant 0 : index
    %49 = vector.load %arg8[%c0_27, %c0_28] : memref<16x128xf32, #tpu.memory_space<vmem>>, vector<16x128xf32>
    tpu.vector_store %arg8[%c0_27, %c0_28], %48 {strides = array<i32>} : memref<16x128xf32, #tpu.memory_space<vmem>>, vector<16x128xf32>,
    return
  }
  func.func @transform_0(%arg0: i32) -> (i32, i32) {
    %c0_i32 = arith.constant 0 : i32
    %c0_i32_0 = arith.constant 0 : i32
    return %arg0, %c0_i32 : i32, i32
  }
  func.func @transform_1(%arg0: i32) -> (i32, i32) {
    %c0_i32 = arith.constant 0 : i32
    %c0_i32_0 = arith.constant 0 : i32
    %c0_i32_1 = arith.constant 0 : i32
    return %c0_i32, %c0_i32_0 : i32, i32
  }
  func.func @transform_2(%arg0: i32) -> (i32, i32) {
    %c0_i32 = arith.constant 0 : i32
    %c0_i32_0 = arith.constant 0 : i32
    %c0_i32_1 = arith.constant 0 : i32
    return %c0_i32, %c0_i32_0 : i32, i32
  }
  func.func @transform_3(%arg0: i32) -> (i32, i32) {
    %c0_i32 = arith.constant 0 : i32
    %c0_i32_0 = arith.constant 0 : i32
    %c0_i32_1 = arith.constant 0 : i32
    return %c0_i32, %c0_i32_0 : i32, i32
  }
  func.func @transform_4(%arg0: i32) -> (i32, i32) {
    %c0_i32 = arith.constant 0 : i32
    %c0_i32_0 = arith.constant 0 : i32
    %c0_i32_1 = arith.constant 0 : i32
    return %c0_i32, %c0_i32_0 : i32, i32
  }
  func.func @transform_5(%arg0: i32) -> (i32, i32) {
    %c0_i32 = arith.constant 0 : i32
    %c0_i32_0 = arith.constant 0 : i32
    %c0_i32_1 = arith.constant 0 : i32
    return %c0_i32, %c0_i32_0 : i32, i32
  }
  func.func @transform_6(%arg0: i32) -> (i32, i32) {
    %c0_i32 = arith.constant 0 : i32
    %c0_i32_0 = arith.constant 0 : i32
    %c0_i32_1 = arith.constant 0 : i32
    return %c0_i32, %c0_i32_0 : i32, i32
  }
  func.func @transform_7(%arg0: i32) -> (i32, i32) {
    %c0_i32 = arith.constant 0 : i32
    %c0_i32_0 = arith.constant 0 : i32
    return %arg0, %c0_i32 : i32, i32
  }
}

module attributes {stable_mosaic.version = 11 : i64} {
  func.func @encoder_kernel(%arg0: i32, %arg1: memref<16x256xf32, #tpu.memory_space<vmem>>, %arg2: memref<256x512xbf16, #tpu.memory_space<vmem>>, %arg3: memref<1x512xf32, #tpu.memory_space<vmem>>, %arg4: memref<512x128xbf16, #tpu.memory_space<vmem>>, %arg5: memref<1x128xf32, #tpu.memory_space<vmem>>, %arg6: memref<128x128xbf16, #tpu.memory_space<vmem>>, %arg7: memref<1x128xf32, #tpu.memory_space<vmem>>, %arg8: memref<16x128xf32, #tpu.memory_space<vmem>>) attributes {dimension_semantics = [#tpu.dimension_semantics<parallel>], iteration_bounds = array<i64: 1>, scalar_prefetch = 0 : i64, scratch_operands = 0 : i64, tpu.core_type = #tpu.core_type<tc>, window_params = [{transform_indices = @transform_0, window_bounds = array<i64: 16, 256>}, {pipeline_mode = #tpu.pipeline_mode<synchronous>, transform_indices = @transform_1, window_bounds = array<i64: 256, 512>}, {pipeline_mode = #tpu.pipeline_mode<synchronous>, transform_indices = @transform_2, window_bounds = array<i64: 1, 512>}, {pipeline_mode = #tpu.pipeline_mode<synchronous>, transform_indices = @transform_3, window_bounds = array<i64: 512, 128>}, {pipeline_mode = #tpu.pipeline_mode<synchronous>, transform_indices = @transform_4, window_bounds = array<i64: 1, 128>}, {pipeline_mode = #tpu.pipeline_mode<synchronous>, transform_indices = @transform_5, window_bounds = array<i64: 128, 128>}, {pipeline_mode = #tpu.pipeline_mode<synchronous>, transform_indices = @transform_6, window_bounds = array<i64: 1, 128>}, {transform_indices = @transform_7, window_bounds = array<i64: 16, 128>}]} {
    %c0 = arith.constant 0 : index
    %c0_0 = arith.constant 0 : index
    %0 = vector.load %arg1[%c0, %c0_0] : memref<16x256xf32, #tpu.memory_space<vmem>>, vector<16x256xf32>
    %1 = arith.truncf %0 : vector<16x256xf32> to vector<16x256xbf16>
    %c0_1 = arith.constant 0 : index
    %c0_2 = arith.constant 0 : index
    %2 = vector.load %arg2[%c0_1, %c0_2] : memref<256x512xbf16, #tpu.memory_space<vmem>>, vector<256x512xbf16>
    %cst = arith.constant dense<0.000000e+00> : vector<16x512xf32>
    %3 = tpu.matmul %1, %2, %cst {dimension_numbers = #tpu.dot_dimension_numbers<[1], [0], [0], [1], [0, 0, 1, 1], [], []>} : vector<16x256xbf16>, vector<256x512xbf16>, vector<16x512xf32> -> vector<16x512xf32>
    %c0_3 = arith.constant 0 : index
    %c0_4 = arith.constant 0 : index
    %4 = vector.load %arg3[%c0_3, %c0_4] : memref<1x512xf32, #tpu.memory_space<vmem>>, vector<1x512xf32>
    %5 = vector.broadcast %4 : vector<1x512xf32> to vector<16x512xf32>
    %6 = arith.addf %3, %5 : vector<16x512xf32>
    %cst_5 = arith.constant 0.000000e+00 : f32
    %7 = vector.broadcast %cst_5 : f32 to vector<16x512xf32>
    %8 = arith.cmpf ogt, %6, %7 : vector<16x512xf32>
    %9 = math.exp %6 : vector<16x512xf32>
    %cst_6 = arith.constant 1.000000e+00 : f32
    %10 = vector.broadcast %cst_6 : f32 to vector<16x512xf32>
    %11 = arith.subf %9, %10 : vector<16x512xf32>
    %cst_7 = arith.constant 1.67326319 : f32
    %12 = vector.broadcast %cst_7 : f32 to vector<16x512xf32>
    %13 = arith.mulf %12, %11 : vector<16x512xf32>
    %14 = arith.select %8, %6, %13 : vector<16x512xi1>, vector<16x512xf32>
    %cst_8 = arith.constant 1.05070102 : f32
    %15 = vector.broadcast %cst_8 : f32 to vector<16x512xf32>
    %16 = arith.mulf %15, %14 : vector<16x512xf32>
    %17 = arith.truncf %16 : vector<16x512xf32> to vector<16x512xbf16>
    %c0_9 = arith.constant 0 : index
    %c0_10 = arith.constant 0 : index
    %18 = vector.load %arg4[%c0_9, %c0_10] : memref<512x128xbf16, #tpu.memory_space<vmem>>, vector<512x128xbf16>
    %cst_11 = arith.constant dense<0.000000e+00> : vector<16x128xf32>
    %19 = tpu.matmul %17, %18, %cst_11 {dimension_numbers = #tpu.dot_dimension_numbers<[1], [0], [0], [1], [0, 0, 1, 1], [], []>} : vector<16x512xbf16>, vector<512x128xbf16>, vector<16x128xf32> -> vector<16x128xf32>
    %c0_12 = arith.constant 0 : index
    %c0_13 = arith.constant 0 : index
    %20 = vector.load %arg5[%c0_12, %c0_13] : memref<1x128xf32, #tpu.memory_space<vmem>>, vector<1x128xf32>
    %21 = vector.broadcast %20 : vector<1x128xf32> to vector<16x128xf32>
    %22 = arith.addf %19, %21 : vector<16x128xf32>
    %cst_14 = arith.constant 0.000000e+00 : f32
    %23 = vector.broadcast %cst_14 : f32 to vector<16x128xf32>
    %24 = arith.cmpf ogt, %22, %23 : vector<16x128xf32>
    %25 = math.exp %22 : vector<16x128xf32>
    %cst_15 = arith.constant 1.000000e+00 : f32
    %26 = vector.broadcast %cst_15 : f32 to vector<16x128xf32>
    %27 = arith.subf %25, %26 : vector<16x128xf32>
    %cst_16 = arith.constant 1.67326319 : f32
    %28 = vector.broadcast %cst_16 : f32 to vector<16x128xf32>
    %29 = arith.mulf %28, %27 : vector<16x128xf32>
    %30 = arith.select %24, %22, %29 : vector<16x128xi1>, vector<16x128xf32>
    %cst_17 = arith.constant 1.05070102 : f32
    %31 = vector.broadcast %cst_17 : f32 to vector<16x128xf32>
    %32 = arith.mulf %31, %30 : vector<16x128xf32>
    %33 = arith.truncf %32 : vector<16x128xf32> to vector<16x128xbf16>
    %c0_18 = arith.constant 0 : index
    %c0_19 = arith.constant 0 : index
    %34 = vector.load %arg6[%c0_18, %c0_19] : memref<128x128xbf16, #tpu.memory_space<vmem>>, vector<128x128xbf16>
    %cst_20 = arith.constant dense<0.000000e+00> : vector<16x128xf32>
    %35 = tpu.matmul %33, %34, %cst_20 {dimension_numbers = #tpu.dot_dimension_numbers<[1], [0], [0], [1], [0, 0, 1, 1], [], []>} : vector<16x128xbf16>, vector<128x128xbf16>, vector<16x128xf32> -> vector<16x128xf32>
    %c0_21 = arith.constant 0 : index
    %c0_22 = arith.constant 0 : index
    %36 = vector.load %arg7[%c0_21, %c0_22] : memref<1x128xf32, #tpu.memory_space<vmem>>, vector<1x128xf32>
    %37 = vector.broadcast %36 : vector<1x128xf32> to vector<16x128xf32>
    %38 = arith.addf %35, %37 : vector<16x128xf32>
    %cst_23 = arith.constant 0.000000e+00 : f32
    %39 = vector.broadcast %cst_23 : f32 to vector<16x128xf32>
    %40 = arith.cmpf ogt, %38, %39 : vector<16x128xf32>
    %41 = math.exp %38 : vector<16x128xf32>
    %cst_24 = arith.constant 1.000000e+00 : f32
    %42 = vector.broadcast %cst_24 : f32 to vector<16x128xf32>
    %43 = arith.subf %41, %42 : vector<16x128xf32>
    %cst_25 = arith.constant 1.67326319 : f32
    %44 = vector.broadcast %cst_25 : f32 to vector<16x128xf32>
    %45 = arith.mulf %44, %43 : vector<16x128xf32>
    %46 = arith.select %40, %38, %45 : vector<16x128xi1>, vector<16x128xf32>
    %cst_26 = arith.constant 1.05070102 : f32
    %47 = vector.broadcast %cst_26 : f32 to vector<16x128xf32>
    %48 = arith.mulf %47, %46 : vector<16x128xf32>
    %c0_27 = arith.constant 0 : index
    %c0_28 = arith.constant 0 : index
    %49 = vector.load %arg8[%c0_27, %c0_28] : memref<16x128xf32, #tpu.memory_space<vmem>>, vector<16x128xf32>
    tpu.vector_store %arg8[%c0_27, %c0_28], %48 {strides = array<i32>} : memref<16x128xf32, #tpu.memory_space<vmem>>, vector<16x128xf32>,
    return
  }
  func.func @transform_0(%arg0: i32) -> (i32, i32) {
    %c0_i32 = arith.constant 0 : i32
    %c0_i32_0 = arith.constant 0 : i32
    return %arg0, %c0_i32 : i32, i32
  }
  func.func @transform_1(%arg0: i32) -> (i32, i32) {
    %c0_i32 = arith.constant 0 : i32
    %c0_i32_0 = arith.constant 0 : i32
    %c0_i32_1 = arith.constant 0 : i32
    return %c0_i32, %c0_i32_0 : i32, i32
  }
  func.func @transform_2(%arg0: i32) -> (i32, i32) {
    %c0_i32 = arith.constant 0 : i32
    %c0_i32_0 = arith.constant 0 : i32
    %c0_i32_1 = arith.constant 0 : i32
    return %c0_i32, %c0_i32_0 : i32, i32
  }
  func.func @transform_3(%arg0: i32) -> (i32, i32) {
    %c0_i32 = arith.constant 0 : i32
    %c0_i32_0 = arith.constant 0 : i32
    %c0_i32_1 = arith.constant 0 : i32
    return %c0_i32, %c0_i32_0 : i32, i32
  }
  func.func @transform_4(%arg0: i32) -> (i32, i32) {
    %c0_i32 = arith.constant 0 : i32
    %c0_i32_0 = arith.constant 0 : i32
    %c0_i32_1 = arith.constant 0 : i32
    return %c0_i32, %c0_i32_0 : i32, i32
  }
  func.func @transform_5(%arg0: i32) -> (i32, i32) {
    %c0_i32 = arith.constant 0 : i32
    %c0_i32_0 = arith.constant 0 : i32
    %c0_i32_1 = arith.constant 0 : i32
    return %c0_i32, %c0_i32_0 : i32, i32
  }
  func.func @transform_6(%arg0: i32) -> (i32, i32) {
    %c0_i32 = arith.constant 0 : i32
    %c0_i32_0 = arith.constant 0 : i32
    %c0_i32_1 = arith.constant 0 : i32
    return %c0_i32, %c0_i32_0 : i32, i32
  }
  func.func @transform_7(%arg0: i32) -> (i32, i32) {
    %c0_i32 = arith.constant 0 : i32
    %c0_i32_0 = arith.constant 0 : i32
    return %arg0, %c0_i32 : i32, i32
  }
}

</mosaic_0001>

<llo_original>
// kernel: tpu_custom_call.1
$region0: #{tpu_custom_call.1}
  #allocation0 [shape = 'u32[]', space=smem, size = 0x4, offset = 0x4, fixed_abs, tag = 'smem constant byte address 0x4 - core index']
  #allocation1 [shape = 'u32[144,128]{1,0:T(1,128)}', space=vmem, size = 0x12000, scoped, tag = 'internal scratch']
  %s0 = inlined_call_operand.hbm [shape: f32[16,256], index: 0, kind: input, shape index: {}]
  %s1 = inlined_call_operand.hbm [shape: bf16[256,512], index: 1, kind: input, shape index: {}]
  %s2 = inlined_call_operand.hbm [shape: f32[1,512], index: 2, kind: input, shape index: {}]
  %s3 = inlined_call_operand.hbm [shape: bf16[512,128], index: 3, kind: input, shape index: {}]
  %s4 = inlined_call_operand.vmem [shape: f32[1,128], index: 4, kind: input, shape index: {}]
  %s5 = inlined_call_operand.hbm [shape: bf16[128,128], index: 5, kind: input, shape index: {}]
  %s6 = inlined_call_operand.vmem [shape: f32[1,128], index: 6, kind: input, shape index: {}]
  %s7 = inlined_call_operand.hbm [shape: f32[16,128], index: 7, kind: output, shape index: {}]
  %s8 = sld [smem:[#allocation0]]
  $region58: #{tpu_custom_call.1} parent=0
    _
  %s10 = ssub.s32 1, %s8
  %s11 = scalar_select 0, %s10, %s8
  $region1: #{tpu_custom_call.1} parent=0
    #allocation2 [shape = 'u8[16384]{0}', space=vmem, size = 0x4000, scoped, tag = 'input window, operand 0, single buffered']
    #allocation3 [shape = 's32[1]{0}', space=sflag, size = 0x4, scoped, tag = 'scoped memory for tpu_custom_call.1']
    #allocation4 [shape = 's32[1]{0}', space=sflag, size = 0x4, scoped, tag = 'scoped memory for tpu_custom_call.1']
    #allocation5 [shape = 'u8[262144]{0}', space=vmem, size = 0x40000, scoped, tag = 'input window, operand 1, single buffered']
    #allocation6 [shape = 's32[1]{0}', space=sflag, size = 0x4, scoped, tag = 'scoped memory for tpu_custom_call.1']
    #allocation7 [shape = 'u8[2048]{0}', space=vmem, size = 0x800, scoped, tag = 'input window, operand 2, single buffered']
    #allocation8 [shape = 'u8[131072]{0}', space=vmem, size = 0x20000, scoped, tag = 'input window, operand 3, single buffered']
    #allocation9 [shape = 's32[1]{0}', space=sflag, size = 0x4, scoped, tag = 'scoped memory for tpu_custom_call.1']
    #allocation10 [shape = 'u8[32768]{0}', space=vmem, size = 0x8000, scoped, tag = 'input window, operand 5, single buffered']
    #allocation11 [shape = 'u8[8192]{0}', space=vmem, size = 0x2000, scoped, tag = 'output window, operand 0, single buffered']
    %12 = vsyncpa [#allocation3], 0
    %13 = vsyncpa [#allocation6], 0
    %14 = vsyncpa [#allocation9], 0
    %15 = vsyncpa [#allocation4], 0
    // Predicated region
    $region2: #{tpu_custom_call.1} parent=1 // pred_check
      _
    $region3: #{tpu_custom_call.1} parent=1 // pred_check_branch
      %17 = sbr.rel (0) target = $region5
    $region4: #{tpu_custom_call.1} parent=1 // pred_region
      %s19 = ssub.s32 512, 512
      %20 = vsyncadd [#allocation3], %s19
      %s21 = sshll.u32 [#allocation2], 4
      %s22 = int_to_ptr.vmem [resolvable:$true] %s21
      %27 = dma.hbm_to_vmem [thread:$0]  %s0, 512, %s22, [#allocation3], 256, 256, 16
    $region5: #{tpu_custom_call.1} parent=1 // pred_fallthru
      _
    // Predicated region
    $region6: #{tpu_custom_call.1} parent=1 // pred_check
      _
    $region7: #{tpu_custom_call.1} parent=1 // pred_check_branch
      %29 = sbr.rel (0) target = $region9
    $region8: #{tpu_custom_call.1} parent=1 // pred_region
      %s31 = ssub.s32 8192, 8192
      %32 = vsyncadd [#allocation6], %s31
      %s33 = sshll.u32 [#allocation5], 4
      %s34 = int_to_ptr.vmem [resolvable:$true] %s33
      %39 = dma.hbm_to_vmem [thread:$0]  %s1, 8192, %s34, [#allocation6], 256, 256, 16
    $region9: #{tpu_custom_call.1} parent=1 // pred_fallthru
      _
    // Predicated region
    $region10: #{tpu_custom_call.1} parent=1 // pred_check
      _
    $region11: #{tpu_custom_call.1} parent=1 // pred_check_branch
      %41 = sbr.rel (0) target = $region13
    $region12: #{tpu_custom_call.1} parent=1 // pred_region
      %s43 = ssub.s32 64, 64
      %44 = vsyncadd [#allocation6], %s43
      %s46 = sshll.u32 [#allocation7], 4
      %s47 = int_to_ptr.vmem [resolvable:$true] %s46
      %49 = dma.hbm_to_vmem [thread:$0]  %s2, 64, %s47, [#allocation6]
    $region13: #{tpu_custom_call.1} parent=1 // pred_fallthru
      _
    // Predicated region
    $region14: #{tpu_custom_call.1} parent=1 // pred_check
      _
    $region15: #{tpu_custom_call.1} parent=1 // pred_check_branch
      %51 = sbr.rel (0) target = $region17
    $region16: #{tpu_custom_call.1} parent=1 // pred_region
      %s53 = ssub.s32 4096, 4096
      %54 = vsyncadd [#allocation9], %s53
      %s55 = sshll.u32 [#allocation8], 4
      %s56 = int_to_ptr.vmem [resolvable:$true] %s55
      %61 = dma.hbm_to_vmem [thread:$0]  %s3, 4096, %s56, [#allocation9], 64, 64, 4
    $region17: #{tpu_custom_call.1} parent=1 // pred_fallthru
      _
    // Predicated region
    $region18: #{tpu_custom_call.1} parent=1 // pred_check
      _
    $region19: #{tpu_custom_call.1} parent=1 // pred_check_branch
      %63 = sbr.rel (0) target = $region21
    $region20: #{tpu_custom_call.1} parent=1 // pred_region
      _
    $region21: #{tpu_custom_call.1} parent=1 // pred_fallthru
      _
    // Predicated region
    $region22: #{tpu_custom_call.1} parent=1 // pred_check
      _
    $region23: #{tpu_custom_call.1} parent=1 // pred_check_branch
      %65 = sbr.rel (0) target = $region25
    $region24: #{tpu_custom_call.1} parent=1 // pred_region
      %s67 = ssub.s32 1024, 1024
      %68 = vsyncadd [#allocation9], %s67
      %s69 = sshll.u32 [#allocation10], 4
      %s70 = int_to_ptr.vmem [resolvable:$true] %s69
      %75 = dma.hbm_to_vmem [thread:$0]  %s5, 1024, %s70, [#allocation9], 64, 64, 4
    $region25: #{tpu_custom_call.1} parent=1 // pred_fallthru
      _
    // Predicated region
    $region26: #{tpu_custom_call.1} parent=1 // pred_check
      _
    $region27: #{tpu_custom_call.1} parent=1 // pred_check_branch
      %77 = sbr.rel (0) target = $region29
    $region28: #{tpu_custom_call.1} parent=1 // pred_region
      _
    $region29: #{tpu_custom_call.1} parent=1 // pred_fallthru
      _
    // Predicated region
    $region30: #{tpu_custom_call.1} parent=1 // pred_check
      _
    $region31: #{tpu_custom_call.1} parent=1 // pred_check_branch
      %79 = sbr.rel (0) target = $region33
    $region32: #{tpu_custom_call.1} parent=1 // pred_region
      %80 = dma.done [#allocation3], 512
    $region33: #{tpu_custom_call.1} parent=1 // pred_fallthru
      _
    // Predicated region
    $region34: #{tpu_custom_call.1} parent=1 // pred_check
      _
    $region35: #{tpu_custom_call.1} parent=1 // pred_check_branch
      %82 = sbr.rel (0) target = $region37
    $region36: #{tpu_custom_call.1} parent=1 // pred_region
      %83 = dma.done [#allocation6], 8192
    $region37: #{tpu_custom_call.1} parent=1 // pred_fallthru
      _
    // Predicated region
    $region38: #{tpu_custom_call.1} parent=1 // pred_check
      _
    $region39: #{tpu_custom_call.1} parent=1 // pred_check_branch
      %85 = sbr.rel (0) target = $region41
    $region40: #{tpu_custom_call.1} parent=1 // pred_region
      %86 = dma.done [#allocation6], 64
    $region41: #{tpu_custom_call.1} parent=1 // pred_fallthru
      _
    // Predicated region
    $region42: #{tpu_custom_call.1} parent=1 // pred_check
      _
    $region43: #{tpu_custom_call.1} parent=1 // pred_check_branch
      %88 = sbr.rel (0) target = $region45
    $region44: #{tpu_custom_call.1} parent=1 // pred_region
      %89 = dma.done [#allocation9], 4096
    $region45: #{tpu_custom_call.1} parent=1 // pred_fallthru
      _
    // Predicated region
    $region46: #{tpu_custom_call.1} parent=1 // pred_check
      _
    $region47: #{tpu_custom_call.1} parent=1 // pred_check_branch
      %91 = sbr.rel (0) target = $region49
    $region48: #{tpu_custom_call.1} parent=1 // pred_region
      %92 = dma.done [#allocation9], 1024
    $region49: #{tpu_custom_call.1} parent=1 // pred_fallthru
      _
    %v94 = vld [vmem:[#allocation2] sm:$0xff]
    %v95 = vld [vmem:[#allocation2 + $0x8] sm:$0xff]
    %v96 = vld [vmem:[#allocation2 + $0x10] sm:$0xff]
    %v97 = vld [vmem:[#allocation2 + $0x18] sm:$0xff]
    %v98 = vpack.c.bf16 %v96, %v94
    %v99 = vpack.c.bf16 %v97, %v95
    %v100 = vld [vmem:[#allocation5] sm:$0xff]
    %v101 = vld [vmem:[#allocation5 + $0x8] sm:$0xff]
    %v102 = vld [vmem:[#allocation5 + $0x10] sm:$0xff]
    %v103 = vld [vmem:[#allocation5 + $0x18] sm:$0xff]
    %v104 = vld [vmem:[#allocation5 + $0x20] sm:$0xff]
    %v105 = vld [vmem:[#allocation5 + $0x28] sm:$0xff]
    %v106 = vld [vmem:[#allocation5 + $0x30] sm:$0xff]
    %v107 = vld [vmem:[#allocation5 + $0x38] sm:$0xff]
    %v108 = vld [vmem:[#allocation5 + $0x40] sm:$0xff]
    %v109 = vld [vmem:[#allocation5 + $0x48] sm:$0xff]
    %v110 = vld [vmem:[#allocation5 + $0x50] sm:$0xff]
    %v111 = vld [vmem:[#allocation5 + $0x58] sm:$0xff]
    %v112 = vld [vmem:[#allocation5 + $0x60] sm:$0xff]
    %v113 = vld [vmem:[#allocation5 + $0x68] sm:$0xff]
    %v114 = vld [vmem:[#allocation5 + $0x70] sm:$0xff]
    %v115 = vld [vmem:[#allocation5 + $0x78] sm:$0xff]
    %v116 = vld [vmem:[#allocation5 + $0x80] sm:$0xff]
    %v117 = vld [vmem:[#allocation5 + $0x88] sm:$0xff]
    %v118 = vld [vmem:[#allocation5 + $0x90] sm:$0xff]
    %v119 = vld [vmem:[#allocation5 + $0x98] sm:$0xff]
    %v120 = vld [vmem:[#allocation5 + $0xa0] sm:$0xff]
    %v121 = vld [vmem:[#allocation5 + $0xa8] sm:$0xff]
    %v122 = vld [vmem:[#allocation5 + $0xb0] sm:$0xff]
    %v123 = vld [vmem:[#allocation5 + $0xb8] sm:$0xff]
    %v124 = vld [vmem:[#allocation5 + $0xc0] sm:$0xff]
    %v125 = vld [vmem:[#allocation5 + $0xc8] sm:$0xff]
    %v126 = vld [vmem:[#allocation5 + $0xd0] sm:$0xff]
    %v127 = vld [vmem:[#allocation5 + $0xd8] sm:$0xff]
    %v128 = vld [vmem:[#allocation5 + $0xe0] sm:$0xff]
    %v129 = vld [vmem:[#allocation5 + $0xe8] sm:$0xff]
    %v130 = vld [vmem:[#allocation5 + $0xf0] sm:$0xff]
    %v131 = vld [vmem:[#allocation5 + $0xf8] sm:$0xff]
    %v132 = vld [vmem:[#allocation5 + $0x100] sm:$0xff]
    %v133 = vld [vmem:[#allocation5 + $0x108] sm:$0xff]
    %v134 = vld [vmem:[#allocation5 + $0x110] sm:$0xff]
    %v135 = vld [vmem:[#allocation5 + $0x118] sm:$0xff]
    %v136 = vld [vmem:[#allocation5 + $0x120] sm:$0xff]
    %v137 = vld [vmem:[#allocation5 + $0x128] sm:$0xff]
    %v138 = vld [vmem:[#allocation5 + $0x130] sm:$0xff]
    %v139 = vld [vmem:[#allocation5 + $0x138] sm:$0xff]
    %v140 = vld [vmem:[#allocation5 + $0x140] sm:$0xff]
    %v141 = vld [vmem:[#allocation5 + $0x148] sm:$0xff]
    %v142 = vld [vmem:[#allocation5 + $0x150] sm:$0xff]
    %v143 = vld [vmem:[#allocation5 + $0x158] sm:$0xff]
    %v144 = vld [vmem:[#allocation5 + $0x160] sm:$0xff]
    %v145 = vld [vmem:[#allocation5 + $0x168] sm:$0xff]
    %v146 = vld [vmem:[#allocation5 + $0x170] sm:$0xff]
    %v147 = vld [vmem:[#allocation5 + $0x178] sm:$0xff]
    %v148 = vld [vmem:[#allocation5 + $0x180] sm:$0xff]
    %v149 = vld [vmem:[#allocation5 + $0x188] sm:$0xff]
    %v150 = vld [vmem:[#allocation5 + $0x190] sm:$0xff]
    %v151 = vld [vmem:[#allocation5 + $0x198] sm:$0xff]
    %v152 = vld [vmem:[#allocation5 + $0x1a0] sm:$0xff]
    %v153 = vld [vmem:[#allocation5 + $0x1a8] sm:$0xff]
    %v154 = vld [vmem:[#allocation5 + $0x1b0] sm:$0xff]
    %v155 = vld [vmem:[#allocation5 + $0x1b8] sm:$0xff]
    %v156 = vld [vmem:[#allocation5 + $0x1c0] sm:$0xff]
    %v157 = vld [vmem:[#allocation5 + $0x1c8] sm:$0xff]
    %v158 = vld [vmem:[#allocation5 + $0x1d0] sm:$0xff]
    %v159 = vld [vmem:[#allocation5 + $0x1d8] sm:$0xff]
    %v160 = vld [vmem:[#allocation5 + $0x1e0] sm:$0xff]
    %v161 = vld [vmem:[#allocation5 + $0x1e8] sm:$0xff]
    %v162 = vld [vmem:[#allocation5 + $0x1f0] sm:$0xff]
    %v163 = vld [vmem:[#allocation5 + $0x1f8] sm:$0xff]
    %v164 = vld [vmem:[#allocation7] sm:$0xf]
    %v166 = vlaneseq
    %v167 = vshrl.u32 %v166, 7
    %v168 = vsub.s32 0, %v167
    %v169 = vrot.slane %v164, %v168
    %v170 = vlaneseq
    %v171 = vshrl.u32 %v170, 7
    %v172 = vsub.s32 1, %v171
    %v173 = vrot.slane %v164, %v172
    %v174 = vlaneseq
    %v175 = vshrl.u32 %v174, 7
    %v176 = vsub.s32 2, %v175
    %v177 = vrot.slane %v164, %v176
    %v178 = vlaneseq
    %v179 = vshrl.u32 %v178, 7
    %v180 = vsub.s32 3, %v179
    %v181 = vrot.slane %v164, %v180
    %v250 = vunpack.c.l.b16 %v100
    %v251 = vunpack.c.h.b16 %v100
    %v252 = vunpack.c.l.b16 %v101
    %v253 = vunpack.c.h.b16 %v101
    %v254 = vunpack.c.l.b16 %v102
    %v255 = vunpack.c.h.b16 %v102
    %v256 = vunpack.c.l.b16 %v103
    %v257 = vunpack.c.h.b16 %v103
    %v258 = vunpack.c.l.b16 %v104
    %v259 = vunpack.c.h.b16 %v104
    %v260 = vunpack.c.l.b16 %v105
    %v261 = vunpack.c.h.b16 %v105
    %v262 = vunpack.c.l.b16 %v106
    %v263 = vunpack.c.h.b16 %v106
    %v264 = vunpack.c.l.b16 %v107
    %v265 = vunpack.c.h.b16 %v107
    %v266 = vunpack.c.l.b16 %v108
    %v267 = vunpack.c.h.b16 %v108
    %v268 = vunpack.c.l.b16 %v109
    %v269 = vunpack.c.h.b16 %v109
    %v270 = vunpack.c.l.b16 %v110
    %v271 = vunpack.c.h.b16 %v110
    %v272 = vunpack.c.l.b16 %v111
    %v273 = vunpack.c.h.b16 %v111
    %v274 = vunpack.c.l.b16 %v112
    %v275 = vunpack.c.h.b16 %v112
    %v276 = vunpack.c.l.b16 %v113
    %v277 = vunpack.c.h.b16 %v113
    %v278 = vunpack.c.l.b16 %v114
    %v279 = vunpack.c.h.b16 %v114
    %v280 = vunpack.c.l.b16 %v115
    %v281 = vunpack.c.h.b16 %v115
    %v282 = vunpack.c.l.b16 %v116
    %v283 = vunpack.c.h.b16 %v116
    %v284 = vunpack.c.l.b16 %v117
    %v285 = vunpack.c.h.b16 %v117
    %v286 = vunpack.c.l.b16 %v118
    %v287 = vunpack.c.h.b16 %v118
    %v288 = vunpack.c.l.b16 %v119
    %v289 = vunpack.c.h.b16 %v119
    %v290 = vunpack.c.l.b16 %v120
    %v291 = vunpack.c.h.b16 %v120
    %v292 = vunpack.c.l.b16 %v121
    %v293 = vunpack.c.h.b16 %v121
    %v294 = vunpack.c.l.b16 %v122
    %v295 = vunpack.c.h.b16 %v122
    %v296 = vunpack.c.l.b16 %v123
    %v297 = vunpack.c.h.b16 %v123
    %v298 = vunpack.c.l.b16 %v124
    %v299 = vunpack.c.h.b16 %v124
    %v300 = vunpack.c.l.b16 %v125
    %v301 = vunpack.c.h.b16 %v125
    %v302 = vunpack.c.l.b16 %v126
    %v303 = vunpack.c.h.b16 %v126
    %v304 = vunpack.c.l.b16 %v127
    %v305 = vunpack.c.h.b16 %v127
    %v306 = vunpack.c.l.b16 %v128
    %v307 = vunpack.c.h.b16 %v128
    %v308 = vunpack.c.l.b16 %v129
    %v309 = vunpack.c.h.b16 %v129
    %v310 = vunpack.c.l.b16 %v130
    %v311 = vunpack.c.h.b16 %v130
    %v312 = vunpack.c.l.b16 %v131
    %v313 = vunpack.c.h.b16 %v131
    %v314 = vunpack.c.l.b16 %v132
    %v315 = vunpack.c.h.b16 %v132
    %v316 = vunpack.c.l.b16 %v133
    %v317 = vunpack.c.h.b16 %v133
    %v318 = vunpack.c.l.b16 %v134
    %v319 = vunpack.c.h.b16 %v134
    %v320 = vunpack.c.l.b16 %v135
    %v321 = vunpack.c.h.b16 %v135
    %v322 = vunpack.c.l.b16 %v136
    %v323 = vunpack.c.h.b16 %v136
    %v324 = vunpack.c.l.b16 %v137
    %v325 = vunpack.c.h.b16 %v137
    %v326 = vunpack.c.l.b16 %v138
    %v327 = vunpack.c.h.b16 %v138
    %v328 = vunpack.c.l.b16 %v139
    %v329 = vunpack.c.h.b16 %v139
    %v330 = vunpack.c.l.b16 %v140
    %v331 = vunpack.c.h.b16 %v140
    %v332 = vunpack.c.l.b16 %v141
    %v333 = vunpack.c.h.b16 %v141
    %v334 = vunpack.c.l.b16 %v142
    %v335 = vunpack.c.h.b16 %v142
    %v336 = vunpack.c.l.b16 %v143
    %v337 = vunpack.c.h.b16 %v143
    %v338 = vunpack.c.l.b16 %v144
    %v339 = vunpack.c.h.b16 %v144
    %v340 = vunpack.c.l.b16 %v145
    %v341 = vunpack.c.h.b16 %v145
    %v342 = vunpack.c.l.b16 %v146
    %v343 = vunpack.c.h.b16 %v146
    %v344 = vunpack.c.l.b16 %v147
    %v345 = vunpack.c.h.b16 %v147
    %v346 = vunpack.c.l.b16 %v148
    %v347 = vunpack.c.h.b16 %v148
    %v348 = vunpack.c.l.b16 %v149
    %v349 = vunpack.c.h.b16 %v149
    %v350 = vunpack.c.l.b16 %v150
    %v351 = vunpack.c.h.b16 %v150
    %v352 = vunpack.c.l.b16 %v151
    %v353 = vunpack.c.h.b16 %v151
    %v354 = vunpack.c.l.b16 %v152
    %v355 = vunpack.c.h.b16 %v152
    %v356 = vunpack.c.l.b16 %v153
    %v357 = vunpack.c.h.b16 %v153
    %v358 = vunpack.c.l.b16 %v154
    %v359 = vunpack.c.h.b16 %v154
    %v360 = vunpack.c.l.b16 %v155
    %v361 = vunpack.c.h.b16 %v155
    %v362 = vunpack.c.l.b16 %v156
    %v363 = vunpack.c.h.b16 %v156
    %v364 = vunpack.c.l.b16 %v157
    %v365 = vunpack.c.h.b16 %v157
    %v366 = vunpack.c.l.b16 %v158
    %v367 = vunpack.c.h.b16 %v158
    %v368 = vunpack.c.l.b16 %v159
    %v369 = vunpack.c.h.b16 %v159
    %v370 = vunpack.c.l.b16 %v160
    %v371 = vunpack.c.h.b16 %v160
    %v372 = vunpack.c.l.b16 %v161
    %v373 = vunpack.c.h.b16 %v161
    %v374 = vunpack.c.l.b16 %v162
    %v375 = vunpack.c.h.b16 %v162
    %v376 = vunpack.c.l.b16 %v163
    %v377 = vunpack.c.h.b16 %v163
    %v378 = vpack.c.b16 %v254, %v250
    %v379 = vpack.c.b16 %v255, %v251
    %v380 = vpack.c.b16 %v256, %v252
    %v381 = vpack.c.b16 %v257, %v253
    %v382 = vpack.c.b16 %v262, %v258
    %v383 = vpack.c.b16 %v263, %v259
    %v384 = vpack.c.b16 %v264, %v260
    %v385 = vpack.c.b16 %v265, %v261
    %v386 = vpack.c.b16 %v270, %v266
    %v387 = vpack.c.b16 %v271, %v267
    %v388 = vpack.c.b16 %v272, %v268
    %v389 = vpack.c.b16 %v273, %v269
    %v390 = vpack.c.b16 %v278, %v274
    %v391 = vpack.c.b16 %v279, %v275
    %v392 = vpack.c.b16 %v280, %v276
    %v393 = vpack.c.b16 %v281, %v277
    %v394 = vpack.c.b16 %v286, %v282
    %v395 = vpack.c.b16 %v287, %v283
    %v396 = vpack.c.b16 %v288, %v284
    %v397 = vpack.c.b16 %v289, %v285
    %v398 = vpack.c.b16 %v294, %v290
    %v399 = vpack.c.b16 %v295, %v291
    %v400 = vpack.c.b16 %v296, %v292
    %v401 = vpack.c.b16 %v297, %v293
    %v402 = vpack.c.b16 %v302, %v298
    %v403 = vpack.c.b16 %v303, %v299
    %v404 = vpack.c.b16 %v304, %v300
    %v405 = vpack.c.b16 %v305, %v301
    %v406 = vpack.c.b16 %v310, %v306
    %v407 = vpack.c.b16 %v311, %v307
    %v408 = vpack.c.b16 %v312, %v308
    %v409 = vpack.c.b16 %v313, %v309
    %v410 = vpack.c.b16 %v318, %v314
    %v411 = vpack.c.b16 %v319, %v315
    %v412 = vpack.c.b16 %v320, %v316
    %v413 = vpack.c.b16 %v321, %v317
    %v414 = vpack.c.b16 %v326, %v322
    %v415 = vpack.c.b16 %v327, %v323
    %v416 = vpack.c.b16 %v328, %v324
    %v417 = vpack.c.b16 %v329, %v325
    %v418 = vpack.c.b16 %v334, %v330
    %v419 = vpack.c.b16 %v335, %v331
    %v420 = vpack.c.b16 %v336, %v332
    %v421 = vpack.c.b16 %v337, %v333
    %v422 = vpack.c.b16 %v342, %v338
    %v423 = vpack.c.b16 %v343, %v339
    %v424 = vpack.c.b16 %v344, %v340
    %v425 = vpack.c.b16 %v345, %v341
    %v426 = vpack.c.b16 %v350, %v346
    %v427 = vpack.c.b16 %v351, %v347
    %v428 = vpack.c.b16 %v352, %v348
    %v429 = vpack.c.b16 %v353, %v349
    %v430 = vpack.c.b16 %v358, %v354
    %v431 = vpack.c.b16 %v359, %v355
    %v432 = vpack.c.b16 %v360, %v356
    %v433 = vpack.c.b16 %v361, %v357
    %v434 = vpack.c.b16 %v366, %v362
    %v435 = vpack.c.b16 %v367, %v363
    %v436 = vpack.c.b16 %v368, %v364
    %v437 = vpack.c.b16 %v369, %v365
    %v438 = vpack.c.b16 %v374, %v370
    %v439 = vpack.c.b16 %v375, %v371
    %v440 = vpack.c.b16 %v376, %v372
    %v441 = vpack.c.b16 %v377, %v373
    %506 = vmatprep.subr.bf16.mxu0 %v407
    %507 = vmatpush1.bf16.msra.mxu0 %v406
    %508 = vmatprep.subr.bf16.mxu0 %v403
    %509 = vmatpush1.bf16.msra.mxu0 %v402
    %510 = vmatprep.subr.bf16.mxu0 %v399
    %511 = vmatpush1.bf16.msra.mxu0 %v398
    %512 = vmatprep.subr.bf16.mxu0 %v395
    %513 = vmatpush1.bf16.msra.mxu0 %v394
    %514 = vmatprep.subr.bf16.mxu0 %v391
    %515 = vmatpush1.bf16.msra.mxu0 %v390
    %516 = vmatprep.subr.bf16.mxu0 %v387
    %517 = vmatpush1.bf16.msra.mxu0 %v386
    %518 = vmatprep.subr.bf16.mxu0 %v383
    %519 = vmatpush1.bf16.msra.mxu0 %v382
    %520 = vmatprep.subr.bf16.mxu0 %v379
    %521 = vmatpush1.bf16.msra.mxu0 %v378
    %522 = vmatprep.subr.bf16.mxu0 %v439
    %523 = vmatpush2.bf16.msra.mxu0 %v438
    %524 = vmatprep.subr.bf16.mxu0 %v435
    %525 = vmatpush2.bf16.msra.mxu0 %v434
    %526 = vmatprep.subr.bf16.mxu0 %v431
    %527 = vmatpush2.bf16.msra.mxu0 %v430
    %528 = vmatprep.subr.bf16.mxu0 %v427
    %529 = vmatpush2.bf16.msra.mxu0 %v426
    %530 = vmatprep.subr.bf16.mxu0 %v423
    %531 = vmatpush2.bf16.msra.mxu0 %v422
    %532 = vmatprep.subr.bf16.mxu0 %v419
    %533 = vmatpush2.bf16.msra.mxu0 %v418
    %534 = vmatprep.subr.bf16.mxu0 %v415
    %535 = vmatpush2.bf16.msra.mxu0 %v414
    %536 = vmatprep.subr.bf16.mxu0 %v411
    %537 = vmatpush2.bf16.msra.mxu0 %v410
    %538 = vmatprep.mubr.bf16.mxu0 %v99
    %539 = vmatmul.mubr.bf16.gmra.mxu0 %v98
    %v540 = vpop.f32.mrf.mxu0
    %v541 = vadd.f32 %v169, %v540
    %v542 = vpop.f32.mrf.mxu0
    %v543 = vadd.f32 %v173, %v542
    %v544 = vpop.f32.mrf.mxu0
    %v545 = vadd.f32 %v169, %v544
    %v546 = vpop.f32.mrf.mxu0
    %v547 = vadd.f32 %v173, %v546
    %548 = vdwg.mxu0
    %549 = vmatprep.subr.bf16.mxu0 %v409
    %550 = vmatpush1.bf16.msra.mxu0 %v408
    %551 = vmatprep.subr.bf16.mxu0 %v405
    %552 = vmatpush1.bf16.msra.mxu0 %v404
    %553 = vmatprep.subr.bf16.mxu0 %v401
    %554 = vmatpush1.bf16.msra.mxu0 %v400
    %555 = vmatprep.subr.bf16.mxu0 %v397
    %556 = vmatpush1.bf16.msra.mxu0 %v396
    %557 = vmatprep.subr.bf16.mxu0 %v393
    %558 = vmatpush1.bf16.msra.mxu0 %v392
    %559 = vmatprep.subr.bf16.mxu0 %v389
    %560 = vmatpush1.bf16.msra.mxu0 %v388
    %561 = vmatprep.subr.bf16.mxu0 %v385
    %562 = vmatpush1.bf16.msra.mxu0 %v384
    %563 = vmatprep.subr.bf16.mxu0 %v381
    %564 = vmatpush1.bf16.msra.mxu0 %v380
    %565 = vmatprep.subr.bf16.mxu0 %v441
    %566 = vmatpush2.bf16.msra.mxu0 %v440
    %567 = vmatprep.subr.bf16.mxu0 %v437
    %568 = vmatpush2.bf16.msra.mxu0 %v436
    %569 = vmatprep.subr.bf16.mxu0 %v433
    %570 = vmatpush2.bf16.msra.mxu0 %v432
    %571 = vmatprep.subr.bf16.mxu0 %v429
    %572 = vmatpush2.bf16.msra.mxu0 %v428
    %573 = vmatprep.subr.bf16.mxu0 %v425
    %574 = vmatpush2.bf16.msra.mxu0 %v424
    %575 = vmatprep.subr.bf16.mxu0 %v421
    %576 = vmatpush2.bf16.msra.mxu0 %v420
    %577 = vmatprep.subr.bf16.mxu0 %v417
    %578 = vmatpush2.bf16.msra.mxu0 %v416
    %579 = vmatprep.subr.bf16.mxu0 %v413
    %580 = vmatpush2.bf16.msra.mxu0 %v412
    %581 = vmatprep.mubr.bf16.mxu0 %v99
    %582 = vmatmul.mubr.bf16.gmra.mxu0 %v98
    %v583 = vpop.f32.mrf.mxu0
    %v584 = vadd.f32 %v177, %v583
    %v585 = vpop.f32.mrf.mxu0
    %v586 = vadd.f32 %v181, %v585
    %v587 = vpop.f32.mrf.mxu0
    %v588 = vadd.f32 %v177, %v587
    %v589 = vpop.f32.mrf.mxu0
    %v590 = vadd.f32 %v181, %v589
    %591 = vdwg.mxu0
    %vm592 = vcmp.gt.f32.partialorder %v541, 0.0
    %vm593 = vcmp.gt.f32.partialorder %v543, 0.0
    %vm594 = vcmp.gt.f32.partialorder %v584, 0.0
    %vm595 = vcmp.gt.f32.partialorder %v586, 0.0
    %vm596 = vcmp.gt.f32.partialorder %v545, 0.0
    %vm597 = vcmp.gt.f32.partialorder %v547, 0.0
    %vm598 = vcmp.gt.f32.partialorder %v588, 0.0
    %vm599 = vcmp.gt.f32.partialorder %v590, 0.0
    %v600 = vmul.f32 %v541, 1.442695
    %v601 = vpow.pop %v600
    %v602 = vmul.f32 %v543, 1.442695
    %v603 = vpow.pop %v602
    %v604 = vmul.f32 %v584, 1.442695
    %v605 = vpow.pop %v604
    %v606 = vmul.f32 %v586, 1.442695
    %v607 = vpow.pop %v606
    %v608 = vmul.f32 %v545, 1.442695
    %v609 = vpow.pop %v608
    %v610 = vmul.f32 %v547, 1.442695
    %v611 = vpow.pop %v610
    %v612 = vmul.f32 %v588, 1.442695
    %v613 = vpow.pop %v612
    %v614 = vmul.f32 %v590, 1.442695
    %v615 = vpow.pop %v614
    %v616 = vsub.f32 %v601, 1.0
    %v617 = vsub.f32 %v603, 1.0
    %v618 = vsub.f32 %v605, 1.0
    %v619 = vsub.f32 %v607, 1.0
    %v620 = vsub.f32 %v609, 1.0
    %v621 = vsub.f32 %v611, 1.0
    %v622 = vsub.f32 %v613, 1.0
    %v623 = vsub.f32 %v615, 1.0
    %v624 = vmul.f32 %v616, 1.6732632
    %v625 = vmul.f32 %v617, 1.6732632
    %v626 = vmul.f32 %v618, 1.6732632
    %v627 = vmul.f32 %v619, 1.6732632
    %v628 = vmul.f32 %v620, 1.6732632
    %v629 = vmul.f32 %v621, 1.6732632
    %v630 = vmul.f32 %v622, 1.6732632
    %v631 = vmul.f32 %v623, 1.6732632
    %v632 = vsel %vm592, %v541, %v624
    %v633 = vsel %vm593, %v543, %v625
    %v634 = vsel %vm594, %v584, %v626
    %v635 = vsel %vm595, %v586, %v627
    %v636 = vsel %vm596, %v545, %v628
    %v637 = vsel %vm597, %v547, %v629
    %v638 = vsel %vm598, %v588, %v630
    %v639 = vsel %vm599, %v590, %v631
    %v640 = vmul.f32 %v632, 1.050701
    %v641 = vmul.f32 %v633, 1.050701
    %v642 = vmul.f32 %v634, 1.050701
    %v643 = vmul.f32 %v635, 1.050701
    %v644 = vmul.f32 %v636, 1.050701
    %v645 = vmul.f32 %v637, 1.050701
    %v646 = vmul.f32 %v638, 1.050701
    %v647 = vmul.f32 %v639, 1.050701
    %v648 = vpack.c.bf16 %v644, %v640
    %v649 = vpack.c.bf16 %v645, %v641
    %v650 = vpack.c.bf16 %v646, %v642
    %v651 = vpack.c.bf16 %v647, %v643
    %v652 = vld [vmem:[#allocation8] sm:$0xf]
    %v653 = vld [vmem:[#allocation8 + $0x4] sm:$0xf]
    %v654 = vld [vmem:[#allocation8 + $0x8] sm:$0xf]
    %v655 = vld [vmem:[#allocation8 + $0xc] sm:$0xf]
    %v656 = vld [vmem:[#allocation8 + $0x10] sm:$0xf]
    %v657 = vld [vmem:[#allocation8 + $0x14] sm:$0xf]
    %v658 = vld [vmem:[#allocation8 + $0x18] sm:$0xf]
    %v659 = vld [vmem:[#allocation8 + $0x1c] sm:$0xf]
    %v660 = vld [vmem:[#allocation8 + $0x20] sm:$0xf]
    %v661 = vld [vmem:[#allocation8 + $0x24] sm:$0xf]
    %v662 = vld [vmem:[#allocation8 + $0x28] sm:$0xf]
    %v663 = vld [vmem:[#allocation8 + $0x2c] sm:$0xf]
    %v664 = vld [vmem:[#allocation8 + $0x30] sm:$0xf]
    %v665 = vld [vmem:[#allocation8 + $0x34] sm:$0xf]
    %v666 = vld [vmem:[#allocation8 + $0x38] sm:$0xf]
    %v667 = vld [vmem:[#allocation8 + $0x3c] sm:$0xf]
    %v668 = vld [vmem:[#allocation8 + $0x40] sm:$0xf]
    %v669 = vld [vmem:[#allocation8 + $0x44] sm:$0xf]
    %v670 = vld [vmem:[#allocation8 + $0x48] sm:$0xf]
    %v671 = vld [vmem:[#allocation8 + $0x4c] sm:$0xf]
    %v672 = vld [vmem:[#allocation8 + $0x50] sm:$0xf]
    %v673 = vld [vmem:[#allocation8 + $0x54] sm:$0xf]
    %v674 = vld [vmem:[#allocation8 + $0x58] sm:$0xf]
    %v675 = vld [vmem:[#allocation8 + $0x5c] sm:$0xf]
    %v676 = vld [vmem:[#allocation8 + $0x60] sm:$0xf]
    %v677 = vld [vmem:[#allocation8 + $0x64] sm:$0xf]
    %v678 = vld [vmem:[#allocation8 + $0x68] sm:$0xf]
    %v679 = vld [vmem:[#allocation8 + $0x6c] sm:$0xf]
    %v680 = vld [vmem:[#allocation8 + $0x70] sm:$0xf]
    %v681 = vld [vmem:[#allocation8 + $0x74] sm:$0xf]
    %v682 = vld [vmem:[#allocation8 + $0x78] sm:$0xf]
    %v683 = vld [vmem:[#allocation8 + $0x7c] sm:$0xf]
    %v684 = vld [vmem:[#allocation8 + $0x80] sm:$0xf]
    %v685 = vld [vmem:[#allocation8 + $0x84] sm:$0xf]
    %v686 = vld [vmem:[#allocation8 + $0x88] sm:$0xf]
    %v687 = vld [vmem:[#allocation8 + $0x8c] sm:$0xf]
    %v688 = vld [vmem:[#allocation8 + $0x90] sm:$0xf]
    %v689 = vld [vmem:[#allocation8 + $0x94] sm:$0xf]
    %v690 = vld [vmem:[#allocation8 + $0x98] sm:$0xf]
    %v691 = vld [vmem:[#allocation8 + $0x9c] sm:$0xf]
    %v692 = vld [vmem:[#allocation8 + $0xa0] sm:$0xf]
    %v693 = vld [vmem:[#allocation8 + $0xa4] sm:$0xf]
    %v694 = vld [vmem:[#allocation8 + $0xa8] sm:$0xf]
    %v695 = vld [vmem:[#allocation8 + $0xac] sm:$0xf]
    %v696 = vld [vmem:[#allocation8 + $0xb0] sm:$0xf]
    %v697 = vld [vmem:[#allocation8 + $0xb4] sm:$0xf]
    %v698 = vld [vmem:[#allocation8 + $0xb8] sm:$0xf]
    %v699 = vld [vmem:[#allocation8 + $0xbc] sm:$0xf]
    %v700 = vld [vmem:[#allocation8 + $0xc0] sm:$0xf]
    %v701 = vld [vmem:[#allocation8 + $0xc4] sm:$0xf]
    %v702 = vld [vmem:[#allocation8 + $0xc8] sm:$0xf]
    %v703 = vld [vmem:[#allocation8 + $0xcc] sm:$0xf]
    %v704 = vld [vmem:[#allocation8 + $0xd0] sm:$0xf]
    %v705 = vld [vmem:[#allocation8 + $0xd4] sm:$0xf]
    %v706 = vld [vmem:[#allocation8 + $0xd8] sm:$0xf]
    %v707 = vld [vmem:[#allocation8 + $0xdc] sm:$0xf]
    %v708 = vld [vmem:[#allocation8 + $0xe0] sm:$0xf]
    %v709 = vld [vmem:[#allocation8 + $0xe4] sm:$0xf]
    %v710 = vld [vmem:[#allocation8 + $0xe8] sm:$0xf]
    %v711 = vld [vmem:[#allocation8 + $0xec] sm:$0xf]
    %v712 = vld [vmem:[#allocation8 + $0xf0] sm:$0xf]
    %v713 = vld [vmem:[#allocation8 + $0xf4] sm:$0xf]
    %v714 = vld [vmem:[#allocation8 + $0xf8] sm:$0xf]
    %v715 = vld [vmem:[#allocation8 + $0xfc] sm:$0xf]
    %v716 = vld [vmem:[%s4] sm:$0x1]
    %v718 = vlaneseq
    %v719 = vshrl.u32 %v718, 7
    %v720 = vsub.s32 0, %v719
    %v721 = vrot.slane %v716, %v720
    %v787 = vunpack.c.l.b16 %v652
    %v788 = vunpack.c.l.b16 %v653
    %v789 = vunpack.c.l.b16 %v654
    %v790 = vunpack.c.l.b16 %v655
    %v791 = vunpack.c.l.b16 %v656
    %v792 = vunpack.c.l.b16 %v657
    %v793 = vunpack.c.l.b16 %v658
    %v794 = vunpack.c.l.b16 %v659
    %v795 = vunpack.c.l.b16 %v660
    %v796 = vunpack.c.l.b16 %v661
    %v797 = vunpack.c.l.b16 %v662
    %v798 = vunpack.c.l.b16 %v663
    %v799 = vunpack.c.l.b16 %v664
    %v800 = vunpack.c.l.b16 %v665
    %v801 = vunpack.c.l.b16 %v666
    %v802 = vunpack.c.l.b16 %v667
    %v803 = vunpack.c.l.b16 %v668
    %v804 = vunpack.c.l.b16 %v669
    %v805 = vunpack.c.l.b16 %v670
    %v806 = vunpack.c.l.b16 %v671
    %v807 = vunpack.c.l.b16 %v672
    %v808 = vunpack.c.l.b16 %v673
    %v809 = vunpack.c.l.b16 %v674
    %v810 = vunpack.c.l.b16 %v675
    %v811 = vunpack.c.l.b16 %v676
    %v812 = vunpack.c.l.b16 %v677
    %v813 = vunpack.c.l.b16 %v678
    %v814 = vunpack.c.l.b16 %v679
    %v815 = vunpack.c.l.b16 %v680
    %v816 = vunpack.c.l.b16 %v681
    %v817 = vunpack.c.l.b16 %v682
    %v818 = vunpack.c.l.b16 %v683
    %v819 = vunpack.c.l.b16 %v684
    %v820 = vunpack.c.l.b16 %v685
    %v821 = vunpack.c.l.b16 %v686
    %v822 = vunpack.c.l.b16 %v687
    %v823 = vunpack.c.l.b16 %v688
    %v824 = vunpack.c.l.b16 %v689
    %v825 = vunpack.c.l.b16 %v690
    %v826 = vunpack.c.l.b16 %v691
    %v827 = vunpack.c.l.b16 %v692
    %v828 = vunpack.c.l.b16 %v693
    %v829 = vunpack.c.l.b16 %v694
    %v830 = vunpack.c.l.b16 %v695
    %v831 = vunpack.c.l.b16 %v696
    %v832 = vunpack.c.l.b16 %v697
    %v833 = vunpack.c.l.b16 %v698
    %v834 = vunpack.c.l.b16 %v699
    %v835 = vunpack.c.l.b16 %v700
    %v836 = vunpack.c.l.b16 %v701
    %v837 = vunpack.c.l.b16 %v702
    %v838 = vunpack.c.l.b16 %v703
    %v839 = vunpack.c.l.b16 %v704
    %v840 = vunpack.c.l.b16 %v705
    %v841 = vunpack.c.l.b16 %v706
    %v842 = vunpack.c.l.b16 %v707
    %v843 = vunpack.c.l.b16 %v708
    %v844 = vunpack.c.l.b16 %v709
    %v845 = vunpack.c.l.b16 %v710
    %v846 = vunpack.c.l.b16 %v711
    %v847 = vunpack.c.l.b16 %v712
    %v848 = vunpack.c.l.b16 %v713
    %v849 = vunpack.c.l.b16 %v714
    %v850 = vunpack.c.l.b16 %v715
    %v851 = vpack.c.b16 %v788, %v787
    %v852 = vpack.c.b16 %v790, %v789
    %v853 = vpack.c.b16 %v792, %v791
    %v854 = vpack.c.b16 %v794, %v793
    %v855 = vpack.c.b16 %v796, %v795
    %v856 = vpack.c.b16 %v798, %v797
    %v857 = vpack.c.b16 %v800, %v799
    %v858 = vpack.c.b16 %v802, %v801
    %v859 = vpack.c.b16 %v804, %v803
    %v860 = vpack.c.b16 %v806, %v805
    %v861 = vpack.c.b16 %v808, %v807
    %v862 = vpack.c.b16 %v810, %v809
    %v863 = vpack.c.b16 %v812, %v811
    %v864 = vpack.c.b16 %v814, %v813
    %v865 = vpack.c.b16 %v816, %v815
    %v866 = vpack.c.b16 %v818, %v817
    %v867 = vpack.c.b16 %v820, %v819
    %v868 = vpack.c.b16 %v822, %v821
    %v869 = vpack.c.b16 %v824, %v823
    %v870 = vpack.c.b16 %v826, %v825
    %v871 = vpack.c.b16 %v828, %v827
    %v872 = vpack.c.b16 %v830, %v829
    %v873 = vpack.c.b16 %v832, %v831
    %v874 = vpack.c.b16 %v834, %v833
    %v875 = vpack.c.b16 %v836, %v835
    %v876 = vpack.c.b16 %v838, %v837
    %v877 = vpack.c.b16 %v840, %v839
    %v878 = vpack.c.b16 %v842, %v841
    %v879 = vpack.c.b16 %v844, %v843
    %v880 = vpack.c.b16 %v846, %v845
    %v881 = vpack.c.b16 %v848, %v847
    %v882 = vpack.c.b16 %v850, %v849
    %915 = vmatprep.subr.bf16.mxu0 0
    %916 = vmatpush1.bf16.msra.mxu0 %v858
    %917 = vmatprep.subr.bf16.mxu0 0
    %918 = vmatpush1.bf16.msra.mxu0 %v857
    %919 = vmatprep.subr.bf16.mxu0 0
    %920 = vmatpush1.bf16.msra.mxu0 %v856
    %921 = vmatprep.subr.bf16.mxu0 0
    %922 = vmatpush1.bf16.msra.mxu0 %v855
    %923 = vmatprep.subr.bf16.mxu0 0
    %924 = vmatpush1.bf16.msra.mxu0 %v854
    %925 = vmatprep.subr.bf16.mxu0 0
    %926 = vmatpush1.bf16.msra.mxu0 %v853
    %927 = vmatprep.subr.bf16.mxu0 0
    %928 = vmatpush1.bf16.msra.mxu0 %v852
    %929 = vmatprep.subr.bf16.mxu0 0
    %930 = vmatpush1.bf16.msra.mxu0 %v851
    %931 = vmatprep.subr.bf16.mxu0 0
    %932 = vmatpush2.bf16.msra.mxu0 %v866
    %933 = vmatprep.subr.bf16.mxu0 0
    %934 = vmatpush2.bf16.msra.mxu0 %v865
    %935 = vmatprep.subr.bf16.mxu0 0
    %936 = vmatpush2.bf16.msra.mxu0 %v864
    %937 = vmatprep.subr.bf16.mxu0 0
    %938 = vmatpush2.bf16.msra.mxu0 %v863
    %939 = vmatprep.subr.bf16.mxu0 0
    %940 = vmatpush2.bf16.msra.mxu0 %v862
    %941 = vmatprep.subr.bf16.mxu0 0
    %942 = vmatpush2.bf16.msra.mxu0 %v861
    %943 = vmatprep.subr.bf16.mxu0 0
    %944 = vmatpush2.bf16.msra.mxu0 %v860
    %945 = vmatprep.subr.bf16.mxu0 0
    %946 = vmatpush2.bf16.msra.mxu0 %v859
    %947 = vmatprep.mubr.bf16.mxu0 %v649
    %948 = vmatmul.mubr.bf16.gmra.mxu0 %v648
    %v949 = vpop.f32.mrf.mxu0
    %v950 = vadd.f32 %v721, %v949
    %v951 = vpop.f32.mrf.mxu0
    %v952 = vpop.f32.mrf.mxu0
    %v953 = vadd.f32 %v721, %v952
    %v954 = vpop.f32.mrf.mxu0
    %955 = vdwg.mxu0
    %956 = vmatprep.subr.bf16.mxu0 0
    %957 = vmatpush1.bf16.msra.mxu0 %v874
    %958 = vmatprep.subr.bf16.mxu0 0
    %959 = vmatpush1.bf16.msra.mxu0 %v873
    %960 = vmatprep.subr.bf16.mxu0 0
    %961 = vmatpush1.bf16.msra.mxu0 %v872
    %962 = vmatprep.subr.bf16.mxu0 0
    %963 = vmatpush1.bf16.msra.mxu0 %v871
    %964 = vmatprep.subr.bf16.mxu0 0
    %965 = vmatpush1.bf16.msra.mxu0 %v870
    %966 = vmatprep.subr.bf16.mxu0 0
    %967 = vmatpush1.bf16.msra.mxu0 %v869
    %968 = vmatprep.subr.bf16.mxu0 0
    %969 = vmatpush1.bf16.msra.mxu0 %v868
    %970 = vmatprep.subr.bf16.mxu0 0
    %971 = vmatpush1.bf16.msra.mxu0 %v867
    %972 = vmatprep.subr.bf16.mxu0 0
    %973 = vmatpush2.bf16.msra.mxu0 %v882
    %974 = vmatprep.subr.bf16.mxu0 0
    %975 = vmatpush2.bf16.msra.mxu0 %v881
    %976 = vmatprep.subr.bf16.mxu0 0
    %977 = vmatpush2.bf16.msra.mxu0 %v880
    %978 = vmatprep.subr.bf16.mxu0 0
    %979 = vmatpush2.bf16.msra.mxu0 %v879
    %980 = vmatprep.subr.bf16.mxu0 0
    %981 = vmatpush2.bf16.msra.mxu0 %v878
    %982 = vmatprep.subr.bf16.mxu0 0
    %983 = vmatpush2.bf16.msra.mxu0 %v877
    %984 = vmatprep.subr.bf16.mxu0 0
    %985 = vmatpush2.bf16.msra.mxu0 %v876
    %986 = vmatprep.subr.bf16.mxu0 0
    %987 = vmatpush2.bf16.msra.mxu0 %v875
    %988 = vmatprep.mubr.bf16.mxu0 %v651
    %989 = vmatmul.mubr.bf16.gmra.mxu0 %v650
    %v990 = vpop.f32.mrf.mxu0
    %v991 = vadd.f32 %v950, %v990
    %v992 = vpop.f32.mrf.mxu0
    %v993 = vpop.f32.mrf.mxu0
    %v994 = vadd.f32 %v953, %v993
    %v995 = vpop.f32.mrf.mxu0
    %996 = vdwg.mxu0
    %vm997 = vcmp.gt.f32.partialorder %v991, 0.0
    %vm998 = vcmp.gt.f32.partialorder %v994, 0.0
    %v999 = vmul.f32 %v991, 1.442695
    %v1000 = vpow.pop %v999
    %v1001 = vmul.f32 %v994, 1.442695
    %v1002 = vpow.pop %v1001
    %v1003 = vsub.f32 %v1000, 1.0
    %v1004 = vsub.f32 %v1002, 1.0
    %v1005 = vmul.f32 %v1003, 1.6732632
    %v1006 = vmul.f32 %v1004, 1.6732632
    %v1007 = vsel %vm997, %v991, %v1005
    %v1008 = vsel %vm998, %v994, %v1006
    %v1009 = vmul.f32 %v1007, 1.050701
    %v1010 = vmul.f32 %v1008, 1.050701
    %v1011 = vpack.c.bf16 %v1010, %v1009
    %v1012 = vld [vmem:[#allocation10] sm:$0xf]
    %v1013 = vld [vmem:[#allocation10 + $0x4] sm:$0xf]
    %v1014 = vld [vmem:[#allocation10 + $0x8] sm:$0xf]
    %v1015 = vld [vmem:[#allocation10 + $0xc] sm:$0xf]
    %v1016 = vld [vmem:[#allocation10 + $0x10] sm:$0xf]
    %v1017 = vld [vmem:[#allocation10 + $0x14] sm:$0xf]
    %v1018 = vld [vmem:[#allocation10 + $0x18] sm:$0xf]
    %v1019 = vld [vmem:[#allocation10 + $0x1c] sm:$0xf]
    %v1020 = vld [vmem:[#allocation10 + $0x20] sm:$0xf]
    %v1021 = vld [vmem:[#allocation10 + $0x24] sm:$0xf]
    %v1022 = vld [vmem:[#allocation10 + $0x28] sm:$0xf]
    %v1023 = vld [vmem:[#allocation10 + $0x2c] sm:$0xf]
    %v1024 = vld [vmem:[#allocation10 + $0x30] sm:$0xf]
    %v1025 = vld [vmem:[#allocation10 + $0x34] sm:$0xf]
    %v1026 = vld [vmem:[#allocation10 + $0x38] sm:$0xf]
    %v1027 = vld [vmem:[#allocation10 + $0x3c] sm:$0xf]
    %v1028 = vld [vmem:[%s6] sm:$0x1]
    %v1030 = vlaneseq
    %v1031 = vshrl.u32 %v1030, 7
    %v1032 = vsub.s32 0, %v1031
    %v1033 = vrot.slane %v1028, %v1032
    %v1051 = vunpack.c.l.b16 %v1012
    %v1052 = vunpack.c.l.b16 %v1013
    %v1053 = vunpack.c.l.b16 %v1014
    %v1054 = vunpack.c.l.b16 %v1015
    %v1055 = vunpack.c.l.b16 %v1016
    %v1056 = vunpack.c.l.b16 %v1017
    %v1057 = vunpack.c.l.b16 %v1018
    %v1058 = vunpack.c.l.b16 %v1019
    %v1059 = vunpack.c.l.b16 %v1020
    %v1060 = vunpack.c.l.b16 %v1021
    %v1061 = vunpack.c.l.b16 %v1022
    %v1062 = vunpack.c.l.b16 %v1023
    %v1063 = vunpack.c.l.b16 %v1024
    %v1064 = vunpack.c.l.b16 %v1025
    %v1065 = vunpack.c.l.b16 %v1026
    %v1066 = vunpack.c.l.b16 %v1027
    %v1067 = vpack.c.b16 %v1052, %v1051
    %v1068 = vpack.c.b16 %v1054, %v1053
    %v1069 = vpack.c.b16 %v1056, %v1055
    %v1070 = vpack.c.b16 %v1058, %v1057
    %v1071 = vpack.c.b16 %v1060, %v1059
    %v1072 = vpack.c.b16 %v1062, %v1061
    %v1073 = vpack.c.b16 %v1064, %v1063
    %v1074 = vpack.c.b16 %v1066, %v1065
    %1083 = vmatprep.subr.bf16.mxu0 0
    %1084 = vmatpush1.bf16.msra.mxu0 %v1074
    %1085 = vmatprep.subr.bf16.mxu0 0
    %1086 = vmatpush1.bf16.msra.mxu0 %v1073
    %1087 = vmatprep.subr.bf16.mxu0 0
    %1088 = vmatpush1.bf16.msra.mxu0 %v1072
    %1089 = vmatprep.subr.bf16.mxu0 0
    %1090 = vmatpush1.bf16.msra.mxu0 %v1071
    %1091 = vmatprep.subr.bf16.mxu0 0
    %1092 = vmatpush1.bf16.msra.mxu0 %v1070
    %1093 = vmatprep.subr.bf16.mxu0 0
    %1094 = vmatpush1.bf16.msra.mxu0 %v1069
    %1095 = vmatprep.subr.bf16.mxu0 0
    %1096 = vmatpush1.bf16.msra.mxu0 %v1068
    %1097 = vmatprep.subr.bf16.mxu0 0
    %1098 = vmatpush1.bf16.msra.mxu0 %v1067
    %1099 = vmatprep.subr.bf16.mxu0 0
    %1100 = vmatpush2.bf16.msra.mxu0 0
    %1101 = vmatprep.subr.bf16.mxu0 0
    %1102 = vmatpush2.bf16.msra.mxu0 0
    %1103 = vmatprep.subr.bf16.mxu0 0
    %1104 = vmatpush2.bf16.msra.mxu0 0
    %1105 = vmatprep.subr.bf16.mxu0 0
    %1106 = vmatpush2.bf16.msra.mxu0 0
    %1107 = vmatprep.subr.bf16.mxu0 0
    %1108 = vmatpush2.bf16.msra.mxu0 0
    %1109 = vmatprep.subr.bf16.mxu0 0
    %1110 = vmatpush2.bf16.msra.mxu0 0
    %1111 = vmatprep.subr.bf16.mxu0 0
    %1112 = vmatpush2.bf16.msra.mxu0 0
    %1113 = vmatprep.subr.bf16.mxu0 0
    %1114 = vmatpush2.bf16.msra.mxu0 0
    %1115 = vmatprep.mubr.bf16.mxu0 0
    %1116 = vmatmul.mubr.bf16.gmra.mxu0 %v1011
    %v1117 = vpop.f32.mrf.mxu0
    %v1118 = vadd.f32 %v1033, %v1117
    %v1119 = vpop.f32.mrf.mxu0
    %v1120 = vpop.f32.mrf.mxu0
    %v1121 = vadd.f32 %v1033, %v1120
    %v1122 = vpop.f32.mrf.mxu0
    %1123 = vdwg.mxu0
    %vm1124 = vcmp.gt.f32.partialorder %v1118, 0.0
    %vm1125 = vcmp.gt.f32.partialorder %v1121, 0.0
    %v1126 = vmul.f32 %v1118, 1.442695
    %v1127 = vpow.pop %v1126
    %v1128 = vmul.f32 %v1121, 1.442695
    %v1129 = vpow.pop %v1128
    %v1130 = vsub.f32 %v1127, 1.0
    %v1131 = vsub.f32 %v1129, 1.0
    %v1132 = vmul.f32 %v1130, 1.6732632
    %v1133 = vmul.f32 %v1131, 1.6732632
    %v1134 = vsel %vm1124, %v1118, %v1132
    %v1135 = vsel %vm1125, %v1121, %v1133
    %v1136 = vmul.f32 %v1134, 1.050701
    %v1137 = vmul.f32 %v1135, 1.050701
    %1138 = vst [vmem:[#allocation11] sm:$0xff] %v1136
    %1139 = vst [vmem:[#allocation11 + $0x8] sm:$0xff] %v1137
    // Predicated region
    $region50: #{tpu_custom_call.1} parent=1 // pred_check
      _
    $region51: #{tpu_custom_call.1} parent=1 // pred_check_branch
      %1141 = sbr.rel (0) target = $region53
    $region52: #{tpu_custom_call.1} parent=1 // pred_region
      %s1143 = ssub.s32 256, 256
      %1144 = vsyncadd [#allocation4], %s1143
      %s1145 = sshll.u32 [#allocation11], 4
      %s1146 = int_to_ptr.vmem [resolvable:$true] %s1145
      %1151 = dma.vmem_to_hbm [thread:$0]  %s1146, 256, %s7, [#allocation4], 128, 128, 8
    $region53: #{tpu_custom_call.1} parent=1 // pred_fallthru
      _
    // Predicated region
    $region54: #{tpu_custom_call.1} parent=1 // pred_check
      _
    $region55: #{tpu_custom_call.1} parent=1 // pred_check_branch
      %1153 = sbr.rel (0) target = $region57
    $region56: #{tpu_custom_call.1} parent=1 // pred_region
      %1154 = dma.done [#allocation4], 256
    $region57: #{tpu_custom_call.1} parent=1 // pred_fallthru
      _
    %1155 = vsyncpa [#allocation3], 1
    %1156 = vsyncpa [#allocation6], 1
    %1157 = vsyncpa [#allocation9], 1
    %1158 = vsyncpa [#allocation4], 1

// kernel: tpu_custom_call.1
$region0: #{tpu_custom_call.1}
  #allocation0 [shape = 'u32[]', space=smem, size = 0x4, offset = 0x4, fixed_abs, tag = 'smem constant byte address 0x4 - core index']
  #allocation1 [shape = 'u32[144,128]{1,0:T(1,128)}', space=vmem, size = 0x12000, scoped, tag = 'internal scratch']
  %s0 = inlined_call_operand.hbm [shape: f32[16,256], index: 0, kind: input, shape index: {}]
  %s1 = inlined_call_operand.hbm [shape: bf16[256,512], index: 1, kind: input, shape index: {}]
  %s2 = inlined_call_operand.hbm [shape: f32[1,512], index: 2, kind: input, shape index: {}]
  %s3 = inlined_call_operand.hbm [shape: bf16[512,128], index: 3, kind: input, shape index: {}]
  %s4 = inlined_call_operand.vmem [shape: f32[1,128], index: 4, kind: input, shape index: {}]
  %s5 = inlined_call_operand.hbm [shape: bf16[128,128], index: 5, kind: input, shape index: {}]
  %s6 = inlined_call_operand.vmem [shape: f32[1,128], index: 6, kind: input, shape index: {}]
  %s7 = inlined_call_operand.hbm [shape: f32[16,128], index: 7, kind: output, shape index: {}]
  %s8 = sld [smem:[#allocation0]]
  $region58: #{tpu_custom_call.1} parent=0
    _
  %s10 = ssub.s32 1, %s8
  %s11 = scalar_select 0, %s10, %s8
  $region1: #{tpu_custom_call.1} parent=0
    #allocation2 [shape = 'u8[16384]{0}', space=vmem, size = 0x4000, scoped, tag = 'input window, operand 0, single buffered']
    #allocation3 [shape = 's32[1]{0}', space=sflag, size = 0x4, scoped, tag = 'scoped memory for tpu_custom_call.1']
    #allocation4 [shape = 's32[1]{0}', space=sflag, size = 0x4, scoped, tag = 'scoped memory for tpu_custom_call.1']
    #allocation5 [shape = 'u8[262144]{0}', space=vmem, size = 0x40000, scoped, tag = 'input window, operand 1, single buffered']
    #allocation6 [shape = 's32[1]{0}', space=sflag, size = 0x4, scoped, tag = 'scoped memory for tpu_custom_call.1']
    #allocation7 [shape = 'u8[2048]{0}', space=vmem, size = 0x800, scoped, tag = 'input window, operand 2, single buffered']
    #allocation8 [shape = 'u8[131072]{0}', space=vmem, size = 0x20000, scoped, tag = 'input window, operand 3, single buffered']
    #allocation9 [shape = 's32[1]{0}', space=sflag, size = 0x4, scoped, tag = 'scoped memory for tpu_custom_call.1']
    #allocation10 [shape = 'u8[32768]{0}', space=vmem, size = 0x8000, scoped, tag = 'input window, operand 5, single buffered']
    #allocation11 [shape = 'u8[8192]{0}', space=vmem, size = 0x2000, scoped, tag = 'output window, operand 0, single buffered']
    %12 = vsyncpa [#allocation3], 0
    %13 = vsyncpa [#allocation6], 0
    %14 = vsyncpa [#allocation9], 0
    %15 = vsyncpa [#allocation4], 0
    // Predicated region
    $region2: #{tpu_custom_call.1} parent=1 // pred_check
      _
    $region3: #{tpu_custom_call.1} parent=1 // pred_check_branch
      %17 = sbr.rel (0) target = $region5
    $region4: #{tpu_custom_call.1} parent=1 // pred_region
      %s19 = ssub.s32 512, 512
      %20 = vsyncadd [#allocation3], %s19
      %s21 = sshll.u32 [#allocation2], 4
      %s22 = int_to_ptr.vmem [resolvable:$true] %s21
      %27 = dma.hbm_to_vmem [thread:$0]  %s0, 512, %s22, [#allocation3], 256, 256, 16
    $region5: #{tpu_custom_call.1} parent=1 // pred_fallthru
      _
    // Predicated region
    $region6: #{tpu_custom_call.1} parent=1 // pred_check
      _
    $region7: #{tpu_custom_call.1} parent=1 // pred_check_branch
      %29 = sbr.rel (0) target = $region9
    $region8: #{tpu_custom_call.1} parent=1 // pred_region
      %s31 = ssub.s32 8192, 8192
      %32 = vsyncadd [#allocation6], %s31
      %s33 = sshll.u32 [#allocation5], 4
      %s34 = int_to_ptr.vmem [resolvable:$true] %s33
      %39 = dma.hbm_to_vmem [thread:$0]  %s1, 8192, %s34, [#allocation6], 256, 256, 16
    $region9: #{tpu_custom_call.1} parent=1 // pred_fallthru
      _
    // Predicated region
    $region10: #{tpu_custom_call.1} parent=1 // pred_check
      _
    $region11: #{tpu_custom_call.1} parent=1 // pred_check_branch
      %41 = sbr.rel (0) target = $region13
    $region12: #{tpu_custom_call.1} parent=1 // pred_region
      %s43 = ssub.s32 64, 64
      %44 = vsyncadd [#allocation6], %s43
      %s46 = sshll.u32 [#allocation7], 4
      %s47 = int_to_ptr.vmem [resolvable:$true] %s46
      %49 = dma.hbm_to_vmem [thread:$0]  %s2, 64, %s47, [#allocation6]
    $region13: #{tpu_custom_call.1} parent=1 // pred_fallthru
      _
    // Predicated region
    $region14: #{tpu_custom_call.1} parent=1 // pred_check
      _
    $region15: #{tpu_custom_call.1} parent=1 // pred_check_branch
      %51 = sbr.rel (0) target = $region17
    $region16: #{tpu_custom_call.1} parent=1 // pred_region
      %s53 = ssub.s32 4096, 4096
      %54 = vsyncadd [#allocation9], %s53
      %s55 = sshll.u32 [#allocation8], 4
      %s56 = int_to_ptr.vmem [resolvable:$true] %s55
      %61 = dma.hbm_to_vmem [thread:$0]  %s3, 4096, %s56, [#allocation9], 64, 64, 4
    $region17: #{tpu_custom_call.1} parent=1 // pred_fallthru
      _
    // Predicated region
    $region18: #{tpu_custom_call.1} parent=1 // pred_check
      _
    $region19: #{tpu_custom_call.1} parent=1 // pred_check_branch
      %63 = sbr.rel (0) target = $region21
    $region20: #{tpu_custom_call.1} parent=1 // pred_region
      _
    $region21: #{tpu_custom_call.1} parent=1 // pred_fallthru
      _
    // Predicated region
    $region22: #{tpu_custom_call.1} parent=1 // pred_check
      _
    $region23: #{tpu_custom_call.1} parent=1 // pred_check_branch
      %65 = sbr.rel (0) target = $region25
    $region24: #{tpu_custom_call.1} parent=1 // pred_region
      %s67 = ssub.s32 1024, 1024
      %68 = vsyncadd [#allocation9], %s67
      %s69 = sshll.u32 [#allocation10], 4
      %s70 = int_to_ptr.vmem [resolvable:$true] %s69
      %75 = dma.hbm_to_vmem [thread:$0]  %s5, 1024, %s70, [#allocation9], 64, 64, 4
    $region25: #{tpu_custom_call.1} parent=1 // pred_fallthru
      _
    // Predicated region
    $region26: #{tpu_custom_call.1} parent=1 // pred_check
      _
    $region27: #{tpu_custom_call.1} parent=1 // pred_check_branch
      %77 = sbr.rel (0) target = $region29
    $region28: #{tpu_custom_call.1} parent=1 // pred_region
      _
    $region29: #{tpu_custom_call.1} parent=1 // pred_fallthru
      _
    // Predicated region
    $region30: #{tpu_custom_call.1} parent=1 // pred_check
      _
    $region31: #{tpu_custom_call.1} parent=1 // pred_check_branch
      %79 = sbr.rel (0) target = $region33
    $region32: #{tpu_custom_call.1} parent=1 // pred_region
      %80 = dma.done [#allocation3], 512
    $region33: #{tpu_custom_call.1} parent=1 // pred_fallthru
      _
    // Predicated region
    $region34: #{tpu_custom_call.1} parent=1 // pred_check
      _
    $region35: #{tpu_custom_call.1} parent=1 // pred_check_branch
      %82 = sbr.rel (0) target = $region37
    $region36: #{tpu_custom_call.1} parent=1 // pred_region
      %83 = dma.done [#allocation6], 8192
    $region37: #{tpu_custom_call.1} parent=1 // pred_fallthru
      _
    // Predicated region
    $region38: #{tpu_custom_call.1} parent=1 // pred_check
      _
    $region39: #{tpu_custom_call.1} parent=1 // pred_check_branch
      %85 = sbr.rel (0) target = $region41
    $region40: #{tpu_custom_call.1} parent=1 // pred_region
      %86 = dma.done [#allocation6], 64
    $region41: #{tpu_custom_call.1} parent=1 // pred_fallthru
      _
    // Predicated region
    $region42: #{tpu_custom_call.1} parent=1 // pred_check
      _
    $region43: #{tpu_custom_call.1} parent=1 // pred_check_branch
      %88 = sbr.rel (0) target = $region45
    $region44: #{tpu_custom_call.1} parent=1 // pred_region
      %89 = dma.done [#allocation9], 4096
    $region45: #{tpu_custom_call.1} parent=1 // pred_fallthru
      _
    // Predicated region
    $region46: #{tpu_custom_call.1} parent=1 // pred_check
      _
    $region47: #{tpu_custom_call.1} parent=1 // pred_check_branch
      %91 = sbr.rel (0) target = $region49
    $region48: #{tpu_custom_call.1} parent=1 // pred_region
      %92 = dma.done [#allocation9], 1024
    $region49: #{tpu_custom_call.1} parent=1 // pred_fallthru
      _
    %v94 = vld [vmem:[#allocation2] sm:$0xff]
    %v95 = vld [vmem:[#allocation2 + $0x8] sm:$0xff]
    %v96 = vld [vmem:[#allocation2 + $0x10] sm:$0xff]
    %v97 = vld [vmem:[#allocation2 + $0x18] sm:$0xff]
    %v98 = vpack.c.bf16 %v96, %v94
    %v99 = vpack.c.bf16 %v97, %v95
    %v100 = vld [vmem:[#allocation5] sm:$0xff]
    %v101 = vld [vmem:[#allocation5 + $0x8] sm:$0xff]
    %v102 = vld [vmem:[#allocation5 + $0x10] sm:$0xff]
    %v103 = vld [vmem:[#allocation5 + $0x18] sm:$0xff]
    %v104 = vld [vmem:[#allocation5 + $0x20] sm:$0xff]
    %v105 = vld [vmem:[#allocation5 + $0x28] sm:$0xff]
    %v106 = vld [vmem:[#allocation5 + $0x30] sm:$0xff]
    %v107 = vld [vmem:[#allocation5 + $0x38] sm:$0xff]
    %v108 = vld [vmem:[#allocation5 + $0x40] sm:$0xff]
    %v109 = vld [vmem:[#allocation5 + $0x48] sm:$0xff]
    %v110 = vld [vmem:[#allocation5 + $0x50] sm:$0xff]
    %v111 = vld [vmem:[#allocation5 + $0x58] sm:$0xff]
    %v112 = vld [vmem:[#allocation5 + $0x60] sm:$0xff]
    %v113 = vld [vmem:[#allocation5 + $0x68] sm:$0xff]
    %v114 = vld [vmem:[#allocation5 + $0x70] sm:$0xff]
    %v115 = vld [vmem:[#allocation5 + $0x78] sm:$0xff]
    %v116 = vld [vmem:[#allocation5 + $0x80] sm:$0xff]
    %v117 = vld [vmem:[#allocation5 + $0x88] sm:$0xff]
    %v118 = vld [vmem:[#allocation5 + $0x90] sm:$0xff]
    %v119 = vld [vmem:[#allocation5 + $0x98] sm:$0xff]
    %v120 = vld [vmem:[#allocation5 + $0xa0] sm:$0xff]
    %v121 = vld [vmem:[#allocation5 + $0xa8] sm:$0xff]
    %v122 = vld [vmem:[#allocation5 + $0xb0] sm:$0xff]
    %v123 = vld [vmem:[#allocation5 + $0xb8] sm:$0xff]
    %v124 = vld [vmem:[#allocation5 + $0xc0] sm:$0xff]
    %v125 = vld [vmem:[#allocation5 + $0xc8] sm:$0xff]
    %v126 = vld [vmem:[#allocation5 + $0xd0] sm:$0xff]
    %v127 = vld [vmem:[#allocation5 + $0xd8] sm:$0xff]
    %v128 = vld [vmem:[#allocation5 + $0xe0] sm:$0xff]
    %v129 = vld [vmem:[#allocation5 + $0xe8] sm:$0xff]
    %v130 = vld [vmem:[#allocation5 + $0xf0] sm:$0xff]
    %v131 = vld [vmem:[#allocation5 + $0xf8] sm:$0xff]
    %v132 = vld [vmem:[#allocation5 + $0x100] sm:$0xff]
    %v133 = vld [vmem:[#allocation5 + $0x108] sm:$0xff]
    %v134 = vld [vmem:[#allocation5 + $0x110] sm:$0xff]
    %v135 = vld [vmem:[#allocation5 + $0x118] sm:$0xff]
    %v136 = vld [vmem:[#allocation5 + $0x120] sm:$0xff]
    %v137 = vld [vmem:[#allocation5 + $0x128] sm:$0xff]
    %v138 = vld [vmem:[#allocation5 + $0x130] sm:$0xff]
    %v139 = vld [vmem:[#allocation5 + $0x138] sm:$0xff]
    %v140 = vld [vmem:[#allocation5 + $0x140] sm:$0xff]
    %v141 = vld [vmem:[#allocation5 + $0x148] sm:$0xff]
    %v142 = vld [vmem:[#allocation5 + $0x150] sm:$0xff]
    %v143 = vld [vmem:[#allocation5 + $0x158] sm:$0xff]
    %v144 = vld [vmem:[#allocation5 + $0x160] sm:$0xff]
    %v145 = vld [vmem:[#allocation5 + $0x168] sm:$0xff]
    %v146 = vld [vmem:[#allocation5 + $0x170] sm:$0xff]
    %v147 = vld [vmem:[#allocation5 + $0x178] sm:$0xff]
    %v148 = vld [vmem:[#allocation5 + $0x180] sm:$0xff]
    %v149 = vld [vmem:[#allocation5 + $0x188] sm:$0xff]
    %v150 = vld [vmem:[#allocation5 + $0x190] sm:$0xff]
    %v151 = vld [vmem:[#allocation5 + $0x198] sm:$0xff]
    %v152 = vld [vmem:[#allocation5 + $0x1a0] sm:$0xff]
    %v153 = vld [vmem:[#allocation5 + $0x1a8] sm:$0xff]
    %v154 = vld [vmem:[#allocation5 + $0x1b0] sm:$0xff]
    %v155 = vld [vmem:[#allocation5 + $0x1b8] sm:$0xff]
    %v156 = vld [vmem:[#allocation5 + $0x1c0] sm:$0xff]
    %v157 = vld [vmem:[#allocation5 + $0x1c8] sm:$0xff]
    %v158 = vld [vmem:[#allocation5 + $0x1d0] sm:$0xff]
    %v159 = vld [vmem:[#allocation5 + $0x1d8] sm:$0xff]
    %v160 = vld [vmem:[#allocation5 + $0x1e0] sm:$0xff]
    %v161 = vld [vmem:[#allocation5 + $0x1e8] sm:$0xff]
    %v162 = vld [vmem:[#allocation5 + $0x1f0] sm:$0xff]
    %v163 = vld [vmem:[#allocation5 + $0x1f8] sm:$0xff]
    %v164 = vld [vmem:[#allocation7] sm:$0xf]
    %v166 = vlaneseq
    %v167 = vshrl.u32 %v166, 7
    %v168 = vsub.s32 0, %v167
    %v169 = vrot.slane %v164, %v168
    %v170 = vlaneseq
    %v171 = vshrl.u32 %v170, 7
    %v172 = vsub.s32 1, %v171
    %v173 = vrot.slane %v164, %v172
    %v174 = vlaneseq
    %v175 = vshrl.u32 %v174, 7
    %v176 = vsub.s32 2, %v175
    %v177 = vrot.slane %v164, %v176
    %v178 = vlaneseq
    %v179 = vshrl.u32 %v178, 7
    %v180 = vsub.s32 3, %v179
    %v181 = vrot.slane %v164, %v180
    %v250 = vunpack.c.l.b16 %v100
    %v251 = vunpack.c.h.b16 %v100
    %v252 = vunpack.c.l.b16 %v101
    %v253 = vunpack.c.h.b16 %v101
    %v254 = vunpack.c.l.b16 %v102
    %v255 = vunpack.c.h.b16 %v102
    %v256 = vunpack.c.l.b16 %v103
    %v257 = vunpack.c.h.b16 %v103
    %v258 = vunpack.c.l.b16 %v104
    %v259 = vunpack.c.h.b16 %v104
    %v260 = vunpack.c.l.b16 %v105
    %v261 = vunpack.c.h.b16 %v105
    %v262 = vunpack.c.l.b16 %v106
    %v263 = vunpack.c.h.b16 %v106
    %v264 = vunpack.c.l.b16 %v107
    %v265 = vunpack.c.h.b16 %v107
    %v266 = vunpack.c.l.b16 %v108
    %v267 = vunpack.c.h.b16 %v108
    %v268 = vunpack.c.l.b16 %v109
    %v269 = vunpack.c.h.b16 %v109
    %v270 = vunpack.c.l.b16 %v110
    %v271 = vunpack.c.h.b16 %v110
    %v272 = vunpack.c.l.b16 %v111
    %v273 = vunpack.c.h.b16 %v111
    %v274 = vunpack.c.l.b16 %v112
    %v275 = vunpack.c.h.b16 %v112
    %v276 = vunpack.c.l.b16 %v113
    %v277 = vunpack.c.h.b16 %v113
    %v278 = vunpack.c.l.b16 %v114
    %v279 = vunpack.c.h.b16 %v114
    %v280 = vunpack.c.l.b16 %v115
    %v281 = vunpack.c.h.b16 %v115
    %v282 = vunpack.c.l.b16 %v116
    %v283 = vunpack.c.h.b16 %v116
    %v284 = vunpack.c.l.b16 %v117
    %v285 = vunpack.c.h.b16 %v117
    %v286 = vunpack.c.l.b16 %v118
    %v287 = vunpack.c.h.b16 %v118
    %v288 = vunpack.c.l.b16 %v119
    %v289 = vunpack.c.h.b16 %v119
    %v290 = vunpack.c.l.b16 %v120
    %v291 = vunpack.c.h.b16 %v120
    %v292 = vunpack.c.l.b16 %v121
    %v293 = vunpack.c.h.b16 %v121
    %v294 = vunpack.c.l.b16 %v122
    %v295 = vunpack.c.h.b16 %v122
    %v296 = vunpack.c.l.b16 %v123
    %v297 = vunpack.c.h.b16 %v123
    %v298 = vunpack.c.l.b16 %v124
    %v299 = vunpack.c.h.b16 %v124
    %v300 = vunpack.c.l.b16 %v125
    %v301 = vunpack.c.h.b16 %v125
    %v302 = vunpack.c.l.b16 %v126
    %v303 = vunpack.c.h.b16 %v126
    %v304 = vunpack.c.l.b16 %v127
    %v305 = vunpack.c.h.b16 %v127
    %v306 = vunpack.c.l.b16 %v128
    %v307 = vunpack.c.h.b16 %v128
    %v308 = vunpack.c.l.b16 %v129
    %v309 = vunpack.c.h.b16 %v129
    %v310 = vunpack.c.l.b16 %v130
    %v311 = vunpack.c.h.b16 %v130
    %v312 = vunpack.c.l.b16 %v131
    %v313 = vunpack.c.h.b16 %v131
    %v314 = vunpack.c.l.b16 %v132
    %v315 = vunpack.c.h.b16 %v132
    %v316 = vunpack.c.l.b16 %v133
    %v317 = vunpack.c.h.b16 %v133
    %v318 = vunpack.c.l.b16 %v134
    %v319 = vunpack.c.h.b16 %v134
    %v320 = vunpack.c.l.b16 %v135
    %v321 = vunpack.c.h.b16 %v135
    %v322 = vunpack.c.l.b16 %v136
    %v323 = vunpack.c.h.b16 %v136
    %v324 = vunpack.c.l.b16 %v137
    %v325 = vunpack.c.h.b16 %v137
    %v326 = vunpack.c.l.b16 %v138
    %v327 = vunpack.c.h.b16 %v138
    %v328 = vunpack.c.l.b16 %v139
    %v329 = vunpack.c.h.b16 %v139
    %v330 = vunpack.c.l.b16 %v140
    %v331 = vunpack.c.h.b16 %v140
    %v332 = vunpack.c.l.b16 %v141
    %v333 = vunpack.c.h.b16 %v141
    %v334 = vunpack.c.l.b16 %v142
    %v335 = vunpack.c.h.b16 %v142
    %v336 = vunpack.c.l.b16 %v143
    %v337 = vunpack.c.h.b16 %v143
    %v338 = vunpack.c.l.b16 %v144
    %v339 = vunpack.c.h.b16 %v144
    %v340 = vunpack.c.l.b16 %v145
    %v341 = vunpack.c.h.b16 %v145
    %v342 = vunpack.c.l.b16 %v146
    %v343 = vunpack.c.h.b16 %v146
    %v344 = vunpack.c.l.b16 %v147
    %v345 = vunpack.c.h.b16 %v147
    %v346 = vunpack.c.l.b16 %v148
    %v347 = vunpack.c.h.b16 %v148
    %v348 = vunpack.c.l.b16 %v149
    %v349 = vunpack.c.h.b16 %v149
    %v350 = vunpack.c.l.b16 %v150
    %v351 = vunpack.c.h.b16 %v150
    %v352 = vunpack.c.l.b16 %v151
    %v353 = vunpack.c.h.b16 %v151
    %v354 = vunpack.c.l.b16 %v152
    %v355 = vunpack.c.h.b16 %v152
    %v356 = vunpack.c.l.b16 %v153
    %v357 = vunpack.c.h.b16 %v153
    %v358 = vunpack.c.l.b16 %v154
    %v359 = vunpack.c.h.b16 %v154
    %v360 = vunpack.c.l.b16 %v155
    %v361 = vunpack.c.h.b16 %v155
    %v362 = vunpack.c.l.b16 %v156
    %v363 = vunpack.c.h.b16 %v156
    %v364 = vunpack.c.l.b16 %v157
    %v365 = vunpack.c.h.b16 %v157
    %v366 = vunpack.c.l.b16 %v158
    %v367 = vunpack.c.h.b16 %v158
    %v368 = vunpack.c.l.b16 %v159
    %v369 = vunpack.c.h.b16 %v159
    %v370 = vunpack.c.l.b16 %v160
    %v371 = vunpack.c.h.b16 %v160
    %v372 = vunpack.c.l.b16 %v161
    %v373 = vunpack.c.h.b16 %v161
    %v374 = vunpack.c.l.b16 %v162
    %v375 = vunpack.c.h.b16 %v162
    %v376 = vunpack.c.l.b16 %v163
    %v377 = vunpack.c.h.b16 %v163
    %v378 = vpack.c.b16 %v254, %v250
    %v379 = vpack.c.b16 %v255, %v251
    %v380 = vpack.c.b16 %v256, %v252
    %v381 = vpack.c.b16 %v257, %v253
    %v382 = vpack.c.b16 %v262, %v258
    %v383 = vpack.c.b16 %v263, %v259
    %v384 = vpack.c.b16 %v264, %v260
    %v385 = vpack.c.b16 %v265, %v261
    %v386 = vpack.c.b16 %v270, %v266
    %v387 = vpack.c.b16 %v271, %v267
    %v388 = vpack.c.b16 %v272, %v268
    %v389 = vpack.c.b16 %v273, %v269
    %v390 = vpack.c.b16 %v278, %v274
    %v391 = vpack.c.b16 %v279, %v275
    %v392 = vpack.c.b16 %v280, %v276
    %v393 = vpack.c.b16 %v281, %v277
    %v394 = vpack.c.b16 %v286, %v282
    %v395 = vpack.c.b16 %v287, %v283
    %v396 = vpack.c.b16 %v288, %v284
    %v397 = vpack.c.b16 %v289, %v285
    %v398 = vpack.c.b16 %v294, %v290
    %v399 = vpack.c.b16 %v295, %v291
    %v400 = vpack.c.b16 %v296, %v292
    %v401 = vpack.c.b16 %v297, %v293
    %v402 = vpack.c.b16 %v302, %v298
    %v403 = vpack.c.b16 %v303, %v299
    %v404 = vpack.c.b16 %v304, %v300
    %v405 = vpack.c.b16 %v305, %v301
    %v406 = vpack.c.b16 %v310, %v306
    %v407 = vpack.c.b16 %v311, %v307
    %v408 = vpack.c.b16 %v312, %v308
    %v409 = vpack.c.b16 %v313, %v309
    %v410 = vpack.c.b16 %v318, %v314
    %v411 = vpack.c.b16 %v319, %v315
    %v412 = vpack.c.b16 %v320, %v316
    %v413 = vpack.c.b16 %v321, %v317
    %v414 = vpack.c.b16 %v326, %v322
    %v415 = vpack.c.b16 %v327, %v323
    %v416 = vpack.c.b16 %v328, %v324
    %v417 = vpack.c.b16 %v329, %v325
    %v418 = vpack.c.b16 %v334, %v330
    %v419 = vpack.c.b16 %v335, %v331
    %v420 = vpack.c.b16 %v336, %v332
    %v421 = vpack.c.b16 %v337, %v333
    %v422 = vpack.c.b16 %v342, %v338
    %v423 = vpack.c.b16 %v343, %v339
    %v424 = vpack.c.b16 %v344, %v340
    %v425 = vpack.c.b16 %v345, %v341
    %v426 = vpack.c.b16 %v350, %v346
    %v427 = vpack.c.b16 %v351, %v347
    %v428 = vpack.c.b16 %v352, %v348
    %v429 = vpack.c.b16 %v353, %v349
    %v430 = vpack.c.b16 %v358, %v354
    %v431 = vpack.c.b16 %v359, %v355
    %v432 = vpack.c.b16 %v360, %v356
    %v433 = vpack.c.b16 %v361, %v357
    %v434 = vpack.c.b16 %v366, %v362
    %v435 = vpack.c.b16 %v367, %v363
    %v436 = vpack.c.b16 %v368, %v364
    %v437 = vpack.c.b16 %v369, %v365
    %v438 = vpack.c.b16 %v374, %v370
    %v439 = vpack.c.b16 %v375, %v371
    %v440 = vpack.c.b16 %v376, %v372
    %v441 = vpack.c.b16 %v377, %v373
    %506 = vmatprep.subr.bf16.mxu0 %v407
    %507 = vmatpush1.bf16.msra.mxu0 %v406
    %508 = vmatprep.subr.bf16.mxu0 %v403
    %509 = vmatpush1.bf16.msra.mxu0 %v402
    %510 = vmatprep.subr.bf16.mxu0 %v399
    %511 = vmatpush1.bf16.msra.mxu0 %v398
    %512 = vmatprep.subr.bf16.mxu0 %v395
    %513 = vmatpush1.bf16.msra.mxu0 %v394
    %514 = vmatprep.subr.bf16.mxu0 %v391
    %515 = vmatpush1.bf16.msra.mxu0 %v390
    %516 = vmatprep.subr.bf16.mxu0 %v387
    %517 = vmatpush1.bf16.msra.mxu0 %v386
    %518 = vmatprep.subr.bf16.mxu0 %v383
    %519 = vmatpush1.bf16.msra.mxu0 %v382
    %520 = vmatprep.subr.bf16.mxu0 %v379
    %521 = vmatpush1.bf16.msra.mxu0 %v378
    %522 = vmatprep.subr.bf16.mxu0 %v439
    %523 = vmatpush2.bf16.msra.mxu0 %v438
    %524 = vmatprep.subr.bf16.mxu0 %v435
    %525 = vmatpush2.bf16.msra.mxu0 %v434
    %526 = vmatprep.subr.bf16.mxu0 %v431
    %527 = vmatpush2.bf16.msra.mxu0 %v430
    %528 = vmatprep.subr.bf16.mxu0 %v427
    %529 = vmatpush2.bf16.msra.mxu0 %v426
    %530 = vmatprep.subr.bf16.mxu0 %v423
    %531 = vmatpush2.bf16.msra.mxu0 %v422
    %532 = vmatprep.subr.bf16.mxu0 %v419
    %533 = vmatpush2.bf16.msra.mxu0 %v418
    %534 = vmatprep.subr.bf16.mxu0 %v415
    %535 = vmatpush2.bf16.msra.mxu0 %v414
    %536 = vmatprep.subr.bf16.mxu0 %v411
    %537 = vmatpush2.bf16.msra.mxu0 %v410
    %538 = vmatprep.mubr.bf16.mxu0 %v99
    %539 = vmatmul.mubr.bf16.gmra.mxu0 %v98
    %v540 = vpop.f32.mrf.mxu0
    %v541 = vadd.f32 %v169, %v540
    %v542 = vpop.f32.mrf.mxu0
    %v543 = vadd.f32 %v173, %v542
    %v544 = vpop.f32.mrf.mxu0
    %v545 = vadd.f32 %v169, %v544
    %v546 = vpop.f32.mrf.mxu0
    %v547 = vadd.f32 %v173, %v546
    %548 = vdwg.mxu0
    %549 = vmatprep.subr.bf16.mxu0 %v409
    %550 = vmatpush1.bf16.msra.mxu0 %v408
    %551 = vmatprep.subr.bf16.mxu0 %v405
    %552 = vmatpush1.bf16.msra.mxu0 %v404
    %553 = vmatprep.subr.bf16.mxu0 %v401
    %554 = vmatpush1.bf16.msra.mxu0 %v400
    %555 = vmatprep.subr.bf16.mxu0 %v397
    %556 = vmatpush1.bf16.msra.mxu0 %v396
    %557 = vmatprep.subr.bf16.mxu0 %v393
    %558 = vmatpush1.bf16.msra.mxu0 %v392
    %559 = vmatprep.subr.bf16.mxu0 %v389
    %560 = vmatpush1.bf16.msra.mxu0 %v388
    %561 = vmatprep.subr.bf16.mxu0 %v385
    %562 = vmatpush1.bf16.msra.mxu0 %v384
    %563 = vmatprep.subr.bf16.mxu0 %v381
    %564 = vmatpush1.bf16.msra.mxu0 %v380
    %565 = vmatprep.subr.bf16.mxu0 %v441
    %566 = vmatpush2.bf16.msra.mxu0 %v440
    %567 = vmatprep.subr.bf16.mxu0 %v437
    %568 = vmatpush2.bf16.msra.mxu0 %v436
    %569 = vmatprep.subr.bf16.mxu0 %v433
    %570 = vmatpush2.bf16.msra.mxu0 %v432
    %571 = vmatprep.subr.bf16.mxu0 %v429
    %572 = vmatpush2.bf16.msra.mxu0 %v428
    %573 = vmatprep.subr.bf16.mxu0 %v425
    %574 = vmatpush2.bf16.msra.mxu0 %v424
    %575 = vmatprep.subr.bf16.mxu0 %v421
    %576 = vmatpush2.bf16.msra.mxu0 %v420
    %577 = vmatprep.subr.bf16.mxu0 %v417
    %578 = vmatpush2.bf16.msra.mxu0 %v416
    %579 = vmatprep.subr.bf16.mxu0 %v413
    %580 = vmatpush2.bf16.msra.mxu0 %v412
    %581 = vmatprep.mubr.bf16.mxu0 %v99
    %582 = vmatmul.mubr.bf16.gmra.mxu0 %v98
    %v583 = vpop.f32.mrf.mxu0
    %v584 = vadd.f32 %v177, %v583
    %v585 = vpop.f32.mrf.mxu0
    %v586 = vadd.f32 %v181, %v585
    %v587 = vpop.f32.mrf.mxu0
    %v588 = vadd.f32 %v177, %v587
    %v589 = vpop.f32.mrf.mxu0
    %v590 = vadd.f32 %v181, %v589
    %591 = vdwg.mxu0
    %vm592 = vcmp.gt.f32.partialorder %v541, 0.0
    %vm593 = vcmp.gt.f32.partialorder %v543, 0.0
    %vm594 = vcmp.gt.f32.partialorder %v584, 0.0
    %vm595 = vcmp.gt.f32.partialorder %v586, 0.0
    %vm596 = vcmp.gt.f32.partialorder %v545, 0.0
    %vm597 = vcmp.gt.f32.partialorder %v547, 0.0
    %vm598 = vcmp.gt.f32.partialorder %v588, 0.0
    %vm599 = vcmp.gt.f32.partialorder %v590, 0.0
    %v600 = vmul.f32 %v541, 1.442695
    %v601 = vpow.pop %v600
    %v602 = vmul.f32 %v543, 1.442695
    %v603 = vpow.pop %v602
    %v604 = vmul.f32 %v584, 1.442695
    %v605 = vpow.pop %v604
    %v606 = vmul.f32 %v586, 1.442695
    %v607 = vpow.pop %v606
    %v608 = vmul.f32 %v545, 1.442695
    %v609 = vpow.pop %v608
    %v610 = vmul.f32 %v547, 1.442695
    %v611 = vpow.pop %v610
    %v612 = vmul.f32 %v588, 1.442695
    %v613 = vpow.pop %v612
    %v614 = vmul.f32 %v590, 1.442695
    %v615 = vpow.pop %v614
    %v616 = vsub.f32 %v601, 1.0
    %v617 = vsub.f32 %v603, 1.0
    %v618 = vsub.f32 %v605, 1.0
    %v619 = vsub.f32 %v607, 1.0
    %v620 = vsub.f32 %v609, 1.0
    %v621 = vsub.f32 %v611, 1.0
    %v622 = vsub.f32 %v613, 1.0
    %v623 = vsub.f32 %v615, 1.0
    %v624 = vmul.f32 %v616, 1.6732632
    %v625 = vmul.f32 %v617, 1.6732632
    %v626 = vmul.f32 %v618, 1.6732632
    %v627 = vmul.f32 %v619, 1.6732632
    %v628 = vmul.f32 %v620, 1.6732632
    %v629 = vmul.f32 %v621, 1.6732632
    %v630 = vmul.f32 %v622, 1.6732632
    %v631 = vmul.f32 %v623, 1.6732632
    %v632 = vsel %vm592, %v541, %v624
    %v633 = vsel %vm593, %v543, %v625
    %v634 = vsel %vm594, %v584, %v626
    %v635 = vsel %vm595, %v586, %v627
    %v636 = vsel %vm596, %v545, %v628
    %v637 = vsel %vm597, %v547, %v629
    %v638 = vsel %vm598, %v588, %v630
    %v639 = vsel %vm599, %v590, %v631
    %v640 = vmul.f32 %v632, 1.050701
    %v641 = vmul.f32 %v633, 1.050701
    %v642 = vmul.f32 %v634, 1.050701
    %v643 = vmul.f32 %v635, 1.050701
    %v644 = vmul.f32 %v636, 1.050701
    %v645 = vmul.f32 %v637, 1.050701
    %v646 = vmul.f32 %v638, 1.050701
    %v647 = vmul.f32 %v639, 1.050701
    %v648 = vpack.c.bf16 %v644, %v640
    %v649 = vpack.c.bf16 %v645, %v641
    %v650 = vpack.c.bf16 %v646, %v642
    %v651 = vpack.c.bf16 %v647, %v643
    %v652 = vld [vmem:[#allocation8] sm:$0xf]
    %v653 = vld [vmem:[#allocation8 + $0x4] sm:$0xf]
    %v654 = vld [vmem:[#allocation8 + $0x8] sm:$0xf]
    %v655 = vld [vmem:[#allocation8 + $0xc] sm:$0xf]
    %v656 = vld [vmem:[#allocation8 + $0x10] sm:$0xf]
    %v657 = vld [vmem:[#allocation8 + $0x14] sm:$0xf]
    %v658 = vld [vmem:[#allocation8 + $0x18] sm:$0xf]
    %v659 = vld [vmem:[#allocation8 + $0x1c] sm:$0xf]
    %v660 = vld [vmem:[#allocation8 + $0x20] sm:$0xf]
    %v661 = vld [vmem:[#allocation8 + $0x24] sm:$0xf]
    %v662 = vld [vmem:[#allocation8 + $0x28] sm:$0xf]
    %v663 = vld [vmem:[#allocation8 + $0x2c] sm:$0xf]
    %v664 = vld [vmem:[#allocation8 + $0x30] sm:$0xf]
    %v665 = vld [vmem:[#allocation8 + $0x34] sm:$0xf]
    %v666 = vld [vmem:[#allocation8 + $0x38] sm:$0xf]
    %v667 = vld [vmem:[#allocation8 + $0x3c] sm:$0xf]
    %v668 = vld [vmem:[#allocation8 + $0x40] sm:$0xf]
    %v669 = vld [vmem:[#allocation8 + $0x44] sm:$0xf]
    %v670 = vld [vmem:[#allocation8 + $0x48] sm:$0xf]
    %v671 = vld [vmem:[#allocation8 + $0x4c] sm:$0xf]
    %v672 = vld [vmem:[#allocation8 + $0x50] sm:$0xf]
    %v673 = vld [vmem:[#allocation8 + $0x54] sm:$0xf]
    %v674 = vld [vmem:[#allocation8 + $0x58] sm:$0xf]
    %v675 = vld [vmem:[#allocation8 + $0x5c] sm:$0xf]
    %v676 = vld [vmem:[#allocation8 + $0x60] sm:$0xf]
    %v677 = vld [vmem:[#allocation8 + $0x64] sm:$0xf]
    %v678 = vld [vmem:[#allocation8 + $0x68] sm:$0xf]
    %v679 = vld [vmem:[#allocation8 + $0x6c] sm:$0xf]
    %v680 = vld [vmem:[#allocation8 + $0x70] sm:$0xf]
    %v681 = vld [vmem:[#allocation8 + $0x74] sm:$0xf]
    %v682 = vld [vmem:[#allocation8 + $0x78] sm:$0xf]
    %v683 = vld [vmem:[#allocation8 + $0x7c] sm:$0xf]
    %v684 = vld [vmem:[#allocation8 + $0x80] sm:$0xf]
    %v685 = vld [vmem:[#allocation8 + $0x84] sm:$0xf]
    %v686 = vld [vmem:[#allocation8 + $0x88] sm:$0xf]
    %v687 = vld [vmem:[#allocation8 + $0x8c] sm:$0xf]
    %v688 = vld [vmem:[#allocation8 + $0x90] sm:$0xf]
    %v689 = vld [vmem:[#allocation8 + $0x94] sm:$0xf]
    %v690 = vld [vmem:[#allocation8 + $0x98] sm:$0xf]
    %v691 = vld [vmem:[#allocation8 + $0x9c] sm:$0xf]
    %v692 = vld [vmem:[#allocation8 + $0xa0] sm:$0xf]
    %v693 = vld [vmem:[#allocation8 + $0xa4] sm:$0xf]
    %v694 = vld [vmem:[#allocation8 + $0xa8] sm:$0xf]
    %v695 = vld [vmem:[#allocation8 + $0xac] sm:$0xf]
    %v696 = vld [vmem:[#allocation8 + $0xb0] sm:$0xf]
    %v697 = vld [vmem:[#allocation8 + $0xb4] sm:$0xf]
    %v698 = vld [vmem:[#allocation8 + $0xb8] sm:$0xf]
    %v699 = vld [vmem:[#allocation8 + $0xbc] sm:$0xf]
    %v700 = vld [vmem:[#allocation8 + $0xc0] sm:$0xf]
    %v701 = vld [vmem:[#allocation8 + $0xc4] sm:$0xf]
    %v702 = vld [vmem:[#allocation8 + $0xc8] sm:$0xf]
    %v703 = vld [vmem:[#allocation8 + $0xcc] sm:$0xf]
    %v704 = vld [vmem:[#allocation8 + $0xd0] sm:$0xf]
    %v705 = vld [vmem:[#allocation8 + $0xd4] sm:$0xf]
    %v706 = vld [vmem:[#allocation8 + $0xd8] sm:$0xf]
    %v707 = vld [vmem:[#allocation8 + $0xdc] sm:$0xf]
    %v708 = vld [vmem:[#allocation8 + $0xe0] sm:$0xf]
    %v709 = vld [vmem:[#allocation8 + $0xe4] sm:$0xf]
    %v710 = vld [vmem:[#allocation8 + $0xe8] sm:$0xf]
    %v711 = vld [vmem:[#allocation8 + $0xec] sm:$0xf]
    %v712 = vld [vmem:[#allocation8 + $0xf0] sm:$0xf]
    %v713 = vld [vmem:[#allocation8 + $0xf4] sm:$0xf]
    %v714 = vld [vmem:[#allocation8 + $0xf8] sm:$0xf]
    %v715 = vld [vmem:[#allocation8 + $0xfc] sm:$0xf]
    %v716 = vld [vmem:[%s4] sm:$0x1]
    %v718 = vlaneseq
    %v719 = vshrl.u32 %v718, 7
    %v720 = vsub.s32 0, %v719
    %v721 = vrot.slane %v716, %v720
    %v787 = vunpack.c.l.b16 %v652
    %v788 = vunpack.c.l.b16 %v653
    %v789 = vunpack.c.l.b16 %v654
    %v790 = vunpack.c.l.b16 %v655
    %v791 = vunpack.c.l.b16 %v656
    %v792 = vunpack.c.l.b16 %v657
    %v793 = vunpack.c.l.b16 %v658
    %v794 = vunpack.c.l.b16 %v659
    %v795 = vunpack.c.l.b16 %v660
    %v796 = vunpack.c.l.b16 %v661
    %v797 = vunpack.c.l.b16 %v662
    %v798 = vunpack.c.l.b16 %v663
    %v799 = vunpack.c.l.b16 %v664
    %v800 = vunpack.c.l.b16 %v665
    %v801 = vunpack.c.l.b16 %v666
    %v802 = vunpack.c.l.b16 %v667
    %v803 = vunpack.c.l.b16 %v668
    %v804 = vunpack.c.l.b16 %v669
    %v805 = vunpack.c.l.b16 %v670
    %v806 = vunpack.c.l.b16 %v671
    %v807 = vunpack.c.l.b16 %v672
    %v808 = vunpack.c.l.b16 %v673
    %v809 = vunpack.c.l.b16 %v674
    %v810 = vunpack.c.l.b16 %v675
    %v811 = vunpack.c.l.b16 %v676
    %v812 = vunpack.c.l.b16 %v677
    %v813 = vunpack.c.l.b16 %v678
    %v814 = vunpack.c.l.b16 %v679
    %v815 = vunpack.c.l.b16 %v680
    %v816 = vunpack.c.l.b16 %v681
    %v817 = vunpack.c.l.b16 %v682
    %v818 = vunpack.c.l.b16 %v683
    %v819 = vunpack.c.l.b16 %v684
    %v820 = vunpack.c.l.b16 %v685
    %v821 = vunpack.c.l.b16 %v686
    %v822 = vunpack.c.l.b16 %v687
    %v823 = vunpack.c.l.b16 %v688
    %v824 = vunpack.c.l.b16 %v689
    %v825 = vunpack.c.l.b16 %v690
    %v826 = vunpack.c.l.b16 %v691
    %v827 = vunpack.c.l.b16 %v692
    %v828 = vunpack.c.l.b16 %v693
    %v829 = vunpack.c.l.b16 %v694
    %v830 = vunpack.c.l.b16 %v695
    %v831 = vunpack.c.l.b16 %v696
    %v832 = vunpack.c.l.b16 %v697
    %v833 = vunpack.c.l.b16 %v698
    %v834 = vunpack.c.l.b16 %v699
    %v835 = vunpack.c.l.b16 %v700
    %v836 = vunpack.c.l.b16 %v701
    %v837 = vunpack.c.l.b16 %v702
    %v838 = vunpack.c.l.b16 %v703
    %v839 = vunpack.c.l.b16 %v704
    %v840 = vunpack.c.l.b16 %v705
    %v841 = vunpack.c.l.b16 %v706
    %v842 = vunpack.c.l.b16 %v707
    %v843 = vunpack.c.l.b16 %v708
    %v844 = vunpack.c.l.b16 %v709
    %v845 = vunpack.c.l.b16 %v710
    %v846 = vunpack.c.l.b16 %v711
    %v847 = vunpack.c.l.b16 %v712
    %v848 = vunpack.c.l.b16 %v713
    %v849 = vunpack.c.l.b16 %v714
    %v850 = vunpack.c.l.b16 %v715
    %v851 = vpack.c.b16 %v788, %v787
    %v852 = vpack.c.b16 %v790, %v789
    %v853 = vpack.c.b16 %v792, %v791
    %v854 = vpack.c.b16 %v794, %v793
    %v855 = vpack.c.b16 %v796, %v795
    %v856 = vpack.c.b16 %v798, %v797
    %v857 = vpack.c.b16 %v800, %v799
    %v858 = vpack.c.b16 %v802, %v801
    %v859 = vpack.c.b16 %v804, %v803
    %v860 = vpack.c.b16 %v806, %v805
    %v861 = vpack.c.b16 %v808, %v807
    %v862 = vpack.c.b16 %v810, %v809
    %v863 = vpack.c.b16 %v812, %v811
    %v864 = vpack.c.b16 %v814, %v813
    %v865 = vpack.c.b16 %v816, %v815
    %v866 = vpack.c.b16 %v818, %v817
    %v867 = vpack.c.b16 %v820, %v819
    %v868 = vpack.c.b16 %v822, %v821
    %v869 = vpack.c.b16 %v824, %v823
    %v870 = vpack.c.b16 %v826, %v825
    %v871 = vpack.c.b16 %v828, %v827
    %v872 = vpack.c.b16 %v830, %v829
    %v873 = vpack.c.b16 %v832, %v831
    %v874 = vpack.c.b16 %v834, %v833
    %v875 = vpack.c.b16 %v836, %v835
    %v876 = vpack.c.b16 %v838, %v837
    %v877 = vpack.c.b16 %v840, %v839
    %v878 = vpack.c.b16 %v842, %v841
    %v879 = vpack.c.b16 %v844, %v843
    %v880 = vpack.c.b16 %v846, %v845
    %v881 = vpack.c.b16 %v848, %v847
    %v882 = vpack.c.b16 %v850, %v849
    %915 = vmatprep.subr.bf16.mxu0 0
    %916 = vmatpush1.bf16.msra.mxu0 %v858
    %917 = vmatprep.subr.bf16.mxu0 0
    %918 = vmatpush1.bf16.msra.mxu0 %v857
    %919 = vmatprep.subr.bf16.mxu0 0
    %920 = vmatpush1.bf16.msra.mxu0 %v856
    %921 = vmatprep.subr.bf16.mxu0 0
    %922 = vmatpush1.bf16.msra.mxu0 %v855
    %923 = vmatprep.subr.bf16.mxu0 0
    %924 = vmatpush1.bf16.msra.mxu0 %v854
    %925 = vmatprep.subr.bf16.mxu0 0
    %926 = vmatpush1.bf16.msra.mxu0 %v853
    %927 = vmatprep.subr.bf16.mxu0 0
    %928 = vmatpush1.bf16.msra.mxu0 %v852
    %929 = vmatprep.subr.bf16.mxu0 0
    %930 = vmatpush1.bf16.msra.mxu0 %v851
    %931 = vmatprep.subr.bf16.mxu0 0
    %932 = vmatpush2.bf16.msra.mxu0 %v866
    %933 = vmatprep.subr.bf16.mxu0 0
    %934 = vmatpush2.bf16.msra.mxu0 %v865
    %935 = vmatprep.subr.bf16.mxu0 0
    %936 = vmatpush2.bf16.msra.mxu0 %v864
    %937 = vmatprep.subr.bf16.mxu0 0
    %938 = vmatpush2.bf16.msra.mxu0 %v863
    %939 = vmatprep.subr.bf16.mxu0 0
    %940 = vmatpush2.bf16.msra.mxu0 %v862
    %941 = vmatprep.subr.bf16.mxu0 0
    %942 = vmatpush2.bf16.msra.mxu0 %v861
    %943 = vmatprep.subr.bf16.mxu0 0
    %944 = vmatpush2.bf16.msra.mxu0 %v860
    %945 = vmatprep.subr.bf16.mxu0 0
    %946 = vmatpush2.bf16.msra.mxu0 %v859
    %947 = vmatprep.mubr.bf16.mxu0 %v649
    %948 = vmatmul.mubr.bf16.gmra.mxu0 %v648
    %v949 = vpop.f32.mrf.mxu0
    %v950 = vadd.f32 %v721, %v949
    %v951 = vpop.f32.mrf.mxu0
    %v952 = vpop.f32.mrf.mxu0
    %v953 = vadd.f32 %v721, %v952
    %v954 = vpop.f32.mrf.mxu0
    %955 = vdwg.mxu0
    %956 = vmatprep.subr.bf16.mxu0 0
    %957 = vmatpush1.bf16.msra.mxu0 %v874
    %958 = vmatprep.subr.bf16.mxu0 0
    %959 = vmatpush1.bf16.msra.mxu0 %v873
    %960 = vmatprep.subr.bf16.mxu0 0
    %961 = vmatpush1.bf16.msra.mxu0 %v872
    %962 = vmatprep.subr.bf16.mxu0 0
    %963 = vmatpush1.bf16.msra.mxu0 %v871
    %964 = vmatprep.subr.bf16.mxu0 0
    %965 = vmatpush1.bf16.msra.mxu0 %v870
    %966 = vmatprep.subr.bf16.mxu0 0
    %967 = vmatpush1.bf16.msra.mxu0 %v869
    %968 = vmatprep.subr.bf16.mxu0 0
    %969 = vmatpush1.bf16.msra.mxu0 %v868
    %970 = vmatprep.subr.bf16.mxu0 0
    %971 = vmatpush1.bf16.msra.mxu0 %v867
    %972 = vmatprep.subr.bf16.mxu0 0
    %973 = vmatpush2.bf16.msra.mxu0 %v882
    %974 = vmatprep.subr.bf16.mxu0 0
    %975 = vmatpush2.bf16.msra.mxu0 %v881
    %976 = vmatprep.subr.bf16.mxu0 0
    %977 = vmatpush2.bf16.msra.mxu0 %v880
    %978 = vmatprep.subr.bf16.mxu0 0
    %979 = vmatpush2.bf16.msra.mxu0 %v879
    %980 = vmatprep.subr.bf16.mxu0 0
    %981 = vmatpush2.bf16.msra.mxu0 %v878
    %982 = vmatprep.subr.bf16.mxu0 0
    %983 = vmatpush2.bf16.msra.mxu0 %v877
    %984 = vmatprep.subr.bf16.mxu0 0
    %985 = vmatpush2.bf16.msra.mxu0 %v876
    %986 = vmatprep.subr.bf16.mxu0 0
    %987 = vmatpush2.bf16.msra.mxu0 %v875
    %988 = vmatprep.mubr.bf16.mxu0 %v651
    %989 = vmatmul.mubr.bf16.gmra.mxu0 %v650
    %v990 = vpop.f32.mrf.mxu0
    %v991 = vadd.f32 %v950, %v990
    %v992 = vpop.f32.mrf.mxu0
    %v993 = vpop.f32.mrf.mxu0
    %v994 = vadd.f32 %v953, %v993
    %v995 = vpop.f32.mrf.mxu0
    %996 = vdwg.mxu0
    %vm997 = vcmp.gt.f32.partialorder %v991, 0.0
    %vm998 = vcmp.gt.f32.partialorder %v994, 0.0
    %v999 = vmul.f32 %v991, 1.442695
    %v1000 = vpow.pop %v999
    %v1001 = vmul.f32 %v994, 1.442695
    %v1002 = vpow.pop %v1001
    %v1003 = vsub.f32 %v1000, 1.0
    %v1004 = vsub.f32 %v1002, 1.0
    %v1005 = vmul.f32 %v1003, 1.6732632
    %v1006 = vmul.f32 %v1004, 1.6732632
    %v1007 = vsel %vm997, %v991, %v1005
    %v1008 = vsel %vm998, %v994, %v1006
    %v1009 = vmul.f32 %v1007, 1.050701
    %v1010 = vmul.f32 %v1008, 1.050701
    %v1011 = vpack.c.bf16 %v1010, %v1009
    %v1012 = vld [vmem:[#allocation10] sm:$0xf]
    %v1013 = vld [vmem:[#allocation10 + $0x4] sm:$0xf]
    %v1014 = vld [vmem:[#allocation10 + $0x8] sm:$0xf]
    %v1015 = vld [vmem:[#allocation10 + $0xc] sm:$0xf]
    %v1016 = vld [vmem:[#allocation10 + $0x10] sm:$0xf]
    %v1017 = vld [vmem:[#allocation10 + $0x14] sm:$0xf]
    %v1018 = vld [vmem:[#allocation10 + $0x18] sm:$0xf]
    %v1019 = vld [vmem:[#allocation10 + $0x1c] sm:$0xf]
    %v1020 = vld [vmem:[#allocation10 + $0x20] sm:$0xf]
    %v1021 = vld [vmem:[#allocation10 + $0x24] sm:$0xf]
    %v1022 = vld [vmem:[#allocation10 + $0x28] sm:$0xf]
    %v1023 = vld [vmem:[#allocation10 + $0x2c] sm:$0xf]
    %v1024 = vld [vmem:[#allocation10 + $0x30] sm:$0xf]
    %v1025 = vld [vmem:[#allocation10 + $0x34] sm:$0xf]
    %v1026 = vld [vmem:[#allocation10 + $0x38] sm:$0xf]
    %v1027 = vld [vmem:[#allocation10 + $0x3c] sm:$0xf]
    %v1028 = vld [vmem:[%s6] sm:$0x1]
    %v1030 = vlaneseq
    %v1031 = vshrl.u32 %v1030, 7
    %v1032 = vsub.s32 0, %v1031
    %v1033 = vrot.slane %v1028, %v1032
    %v1051 = vunpack.c.l.b16 %v1012
    %v1052 = vunpack.c.l.b16 %v1013
    %v1053 = vunpack.c.l.b16 %v1014
    %v1054 = vunpack.c.l.b16 %v1015
    %v1055 = vunpack.c.l.b16 %v1016
    %v1056 = vunpack.c.l.b16 %v1017
    %v1057 = vunpack.c.l.b16 %v1018
    %v1058 = vunpack.c.l.b16 %v1019
    %v1059 = vunpack.c.l.b16 %v1020
    %v1060 = vunpack.c.l.b16 %v1021
    %v1061 = vunpack.c.l.b16 %v1022
    %v1062 = vunpack.c.l.b16 %v1023
    %v1063 = vunpack.c.l.b16 %v1024
    %v1064 = vunpack.c.l.b16 %v1025
    %v1065 = vunpack.c.l.b16 %v1026
    %v1066 = vunpack.c.l.b16 %v1027
    %v1067 = vpack.c.b16 %v1052, %v1051
    %v1068 = vpack.c.b16 %v1054, %v1053
    %v1069 = vpack.c.b16 %v1056, %v1055
    %v1070 = vpack.c.b16 %v1058, %v1057
    %v1071 = vpack.c.b16 %v1060, %v1059
    %v1072 = vpack.c.b16 %v1062, %v1061
    %v1073 = vpack.c.b16 %v1064, %v1063
    %v1074 = vpack.c.b16 %v1066, %v1065
    %1083 = vmatprep.subr.bf16.mxu0 0
    %1084 = vmatpush1.bf16.msra.mxu0 %v1074
    %1085 = vmatprep.subr.bf16.mxu0 0
    %1086 = vmatpush1.bf16.msra.mxu0 %v1073
    %1087 = vmatprep.subr.bf16.mxu0 0
    %1088 = vmatpush1.bf16.msra.mxu0 %v1072
    %1089 = vmatprep.subr.bf16.mxu0 0
    %1090 = vmatpush1.bf16.msra.mxu0 %v1071
    %1091 = vmatprep.subr.bf16.mxu0 0
    %1092 = vmatpush1.bf16.msra.mxu0 %v1070
    %1093 = vmatprep.subr.bf16.mxu0 0
    %1094 = vmatpush1.bf16.msra.mxu0 %v1069
    %1095 = vmatprep.subr.bf16.mxu0 0
    %1096 = vmatpush1.bf16.msra.mxu0 %v1068
    %1097 = vmatprep.subr.bf16.mxu0 0
    %1098 = vmatpush1.bf16.msra.mxu0 %v1067
    %1099 = vmatprep.subr.bf16.mxu0 0
    %1100 = vmatpush2.bf16.msra.mxu0 0
    %1101 = vmatprep.subr.bf16.mxu0 0
    %1102 = vmatpush2.bf16.msra.mxu0 0
    %1103 = vmatprep.subr.bf16.mxu0 0
    %1104 = vmatpush2.bf16.msra.mxu0 0
    %1105 = vmatprep.subr.bf16.mxu0 0
    %1106 = vmatpush2.bf16.msra.mxu0 0
    %1107 = vmatprep.subr.bf16.mxu0 0
    %1108 = vmatpush2.bf16.msra.mxu0 0
    %1109 = vmatprep.subr.bf16.mxu0 0
    %1110 = vmatpush2.bf16.msra.mxu0 0
    %1111 = vmatprep.subr.bf16.mxu0 0
    %1112 = vmatpush2.bf16.msra.mxu0 0
    %1113 = vmatprep.subr.bf16.mxu0 0
    %1114 = vmatpush2.bf16.msra.mxu0 0
    %1115 = vmatprep.mubr.bf16.mxu0 0
    %1116 = vmatmul.mubr.bf16.gmra.mxu0 %v1011
    %v1117 = vpop.f32.mrf.mxu0
    %v1118 = vadd.f32 %v1033, %v1117
    %v1119 = vpop.f32.mrf.mxu0
    %v1120 = vpop.f32.mrf.mxu0
    %v1121 = vadd.f32 %v1033, %v1120
    %v1122 = vpop.f32.mrf.mxu0
    %1123 = vdwg.mxu0
    %vm1124 = vcmp.gt.f32.partialorder %v1118, 0.0
    %vm1125 = vcmp.gt.f32.partialorder %v1121, 0.0
    %v1126 = vmul.f32 %v1118, 1.442695
    %v1127 = vpow.pop %v1126
    %v1128 = vmul.f32 %v1121, 1.442695
    %v1129 = vpow.pop %v1128
    %v1130 = vsub.f32 %v1127, 1.0
    %v1131 = vsub.f32 %v1129, 1.0
    %v1132 = vmul.f32 %v1130, 1.6732632
    %v1133 = vmul.f32 %v1131, 1.6732632
    %v1134 = vsel %vm1124, %v1118, %v1132
    %v1135 = vsel %vm1125, %v1121, %v1133
    %v1136 = vmul.f32 %v1134, 1.050701
    %v1137 = vmul.f32 %v1135, 1.050701
    %1138 = vst [vmem:[#allocation11] sm:$0xff] %v1136
    %1139 = vst [vmem:[#allocation11 + $0x8] sm:$0xff] %v1137
    // Predicated region
    $region50: #{tpu_custom_call.1} parent=1 // pred_check
      _
    $region51: #{tpu_custom_call.1} parent=1 // pred_check_branch
      %1141 = sbr.rel (0) target = $region53
    $region52: #{tpu_custom_call.1} parent=1 // pred_region
      %s1143 = ssub.s32 256, 256
      %1144 = vsyncadd [#allocation4], %s1143
      %s1145 = sshll.u32 [#allocation11], 4
      %s1146 = int_to_ptr.vmem [resolvable:$true] %s1145
      %1151 = dma.vmem_to_hbm [thread:$0]  %s1146, 256, %s7, [#allocation4], 128, 128, 8
    $region53: #{tpu_custom_call.1} parent=1 // pred_fallthru
      _
    // Predicated region
    $region54: #{tpu_custom_call.1} parent=1 // pred_check
      _
    $region55: #{tpu_custom_call.1} parent=1 // pred_check_branch
      %1153 = sbr.rel (0) target = $region57
    $region56: #{tpu_custom_call.1} parent=1 // pred_region
      %1154 = dma.done [#allocation4], 256
    $region57: #{tpu_custom_call.1} parent=1 // pred_fallthru
      _
    %1155 = vsyncpa [#allocation3], 1
    %1156 = vsyncpa [#allocation6], 1
    %1157 = vsyncpa [#allocation9], 1
    %1158 = vsyncpa [#allocation4], 1

</llo_original>
